<compile_context>
chip_gen: v6e
topology: v6e:2x2x1
jax: 0.10.0
libtpu: 0.0.40
codegen_flags: <defaults>
</compile_context>

<pallas_src>
import jax
import jax.numpy as jnp
from jax import lax
from jax.experimental import pallas as pl
from jax.experimental.pallas import tpu as pltpu

# ---------------- config (small synthetic CLIP-ViT shapes) ----------------
BATCH = 2
CHANNELS = 3
IMAGE = 16
PATCH = 8
HIDDEN = 32
HEADS = 4
HEAD_DIM = HIDDEN // HEADS
MLP = 64
LAYERS = 2
EPS = 1e-5

NUM_PATCHES = (IMAGE // PATCH) ** 2       # 4
SEQ = NUM_PATCHES + 1                     # 5 (CLS + patches)
SEQ_PAD = 8                               # padded to a sublane multiple of 8
PATCH_DIM = CHANNELS * PATCH * PATCH      # 192

MXU_DTYPE = jnp.bfloat16                  # activations cast at the MXU boundary
NEG_INF = -1e30                           # finite "-inf" for padded-key masking


# ---------------- kernel helpers ----------------
def _mm(act, w_bf16):
    """(f32 activation) @ (bf16 weight) on the MXU, f32 accumulation."""
    return jnp.dot(act.astype(MXU_DTYPE), w_bf16, preferred_element_type=jnp.float32)


def _layernorm(x, gamma, beta):
    mu = jnp.mean(x, axis=-1, keepdims=True)
    var = jnp.mean(jnp.square(x - mu), axis=-1, keepdims=True)
    return (x - mu) * lax.rsqrt(var + EPS) * gamma + beta


# ---------------- fused forward kernel ----------------
def vision_fwd_kernel(patches_ref, w_patch_ref, cls_ref, pos_ref,
                      pre_g_ref, pre_b_ref,
                      ln1g_ref, ln1b_ref, wqkv_ref, bqkv_ref, wo_ref, bo_ref,
                      ln2g_ref, ln2b_ref, w1_ref, b1_ref, w2_ref, b2_ref,
                      o_ref, x_slab, ctx_slab):
    # --- patch embedding: im2col rows @ bf16 patch weight ---
    pe = _mm(patches_ref[0], w_patch_ref[...])               # (NUM_PATCHES, D) f32

    # --- CLS + patches + position embeddings into a sublane-padded slab ---
    x_slab[0:1, :] = cls_ref[...] + pos_ref[0:1, :]
    x_slab[1:SEQ, :] = pe + pos_ref[1:SEQ, :]
    x_slab[SEQ:SEQ_PAD, :] = jnp.zeros((SEQ_PAD - SEQ, HIDDEN), jnp.float32)

    # --- pre-layernorm (padded zero rows stay finite) ---
    x0 = _layernorm(x_slab[...], pre_g_ref[...], pre_b_ref[...])   # (S_PAD, D) f32

    # padded key columns get a large negative bias before softmax (hoisted)
    key_pos = lax.broadcasted_iota(jnp.int32, (1, 1, SEQ_PAD), 2)
    key_mask = jnp.where(key_pos < SEQ, 0.0, NEG_INF).astype(jnp.float32)

    def layer(li, x):
        # ---------------- self-attention ----------------
        residual = x
        h = _layernorm(x, ln1g_ref[li], ln1b_ref[li])
        h_b = jnp.broadcast_to(h.astype(MXU_DTYPE)[None],
                               (HEADS, SEQ_PAD, HIDDEN))          # (H, S, D) bf16

        wqkv = wqkv_ref[li]                 # (3*HEADS, D, HD) bf16, layer li
        bqkv = bqkv_ref[li]                 # (3*HEADS, 1, HD) f32

        # Q/K/V emitted directly in (HEADS, SEQ_PAD, HEAD_DIM) layout: one
        # head-batched, full-K-depth matmul per projection; no lane slicing of
        # the activation.  Attention scale is pre-folded into the Q weights.
        # (At real CLIP D=768/1024 a single fused (S,D)@(D,3D) matmul with
        #  128-aligned splits is preferable; this layout avoids sub-128 lane
        #  relayouts in the toy config.)
        q = jnp.einsum('hsd,hdk->hsk', h_b, wqkv[0:HEADS],
                       preferred_element_type=jnp.float32) + bqkv[0:HEADS]
        k = jnp.einsum('hsd,hdk->hsk', h_b, wqkv[HEADS:2 * HEADS],
                       preferred_element_type=jnp.float32) + bqkv[HEADS:2 * HEADS]
        v = jnp.einsum('hsd,hdk->hsk', h_b, wqkv[2 * HEADS:3 * HEADS],
                       preferred_element_type=jnp.float32) + bqkv[2 * HEADS:3 * HEADS]

        # one batched score matmul + f32 softmax (EUP reciprocal)
        s = jnp.einsum('hsd,htd->hst', q.astype(MXU_DTYPE), k.astype(MXU_DTYPE),
                       preferred_element_type=jnp.float32)        # (H, S, S)
        s = s + key_mask                                           # mask padded keys
        s = s - jnp.max(s, axis=-1, keepdims=True)
        p = jnp.exp(s)                                             # f32 statistics
        p = p * pl.reciprocal(jnp.sum(p, axis=-1, keepdims=True), approx=True)

        # one batched PV matmul
        ctx = jnp.einsum('hst,htd->hsd', p.astype(MXU_DTYPE), v.astype(MXU_DTYPE),
                         preferred_element_type=jnp.float32)       # (H, S, HD)

        # merge heads ONCE (HEAD_DIM-wide VMEM stores), then a single full-depth
        # (S, D) @ (D, D) output projection (K = HIDDEN systolic fill).
        for hh in range(HEADS):
            ctx_slab[:, hh * HEAD_DIM:(hh + 1) * HEAD_DIM] = ctx[hh]
        x = residual + _mm(ctx_slab[...], wo_ref[li]) + bo_ref[li]

        # ---------------- MLP ----------------
        residual = x
        h = _layernorm(x, ln2g_ref[li], ln2b_ref[li])
        h1 = _mm(h, w1_ref[li]) + b1_ref[li]
        # TODO(synk): on v6e/v7x the sigmoid/exp could run on the bf16 EUP path;
        # kept f32 here so the same kernel is correct on v5e.
        h1 = h1 * jax.nn.sigmoid(1.702 * h1)                       # quick_gelu
        x = residual + _mm(h1, w2_ref[li]) + b2_ref[li]
        return x

    x = lax.fori_loop(0, LAYERS, layer, x0)

    # single store of the real (SEQ, D) rows; padded rows are dropped.
    o_ref[0] = x[0:SEQ].astype(o_ref.dtype)


# ---------------- wrapper ----------------
def _w_spec(shape):
    nd = len(shape)
    # grid-invariant full-array block (Pallas skips re-fetch across consecutive
    # steps since the block index never changes).
    return pl.BlockSpec(shape, lambda b, _nd=nd: (0,) * _nd)


def vision_encoder_forward(pixel_values, params):
    """pixel_values: (B, C, H, W) float32 (already CLIP-preprocessed)."""
    B, C, H, W = pixel_values.shape
    hp, wp = H // PATCH, W // PATCH
    # TODO(synk): at real 224/336px inputs drive im2col via the patches
    # BlockSpec index_map (grid over patch tiles) instead of this XLA
    # reshape/transpose pass over the pixel tensor.
    patches = pixel_values.reshape(B, C, hp, PATCH, wp, PATCH)
    patches = patches.transpose(0, 2, 4, 1, 3, 5).reshape(B, hp * wp, PATCH_DIM)

    weights = (params["w_patch"], params["class_emb"], params["pos_emb"],
               params["pre_ln_g"], params["pre_ln_b"],
               params["ln1_g"], params["ln1_b"],
               params["w_qkv"], params["b_qkv"], params["wo"], params["bo"],
               params["ln2_g"], params["ln2_b"],
               params["w1"], params["b1"], params["w2"], params["b2"])

    in_specs = [pl.BlockSpec((1, NUM_PATCHES, PATCH_DIM), lambda b: (b, 0, 0))]
    in_specs += [_w_spec(w.shape) for w in weights]

    # TODO(synk): at real CLIP-L scale switch to a layer-streamed grid
    # (layer axis outer "arbitrary", image/token tile inner "parallel", weights
    # indexed by the layer grid index, single-buffered weight specs) — the full
    # weight stack does not fit VMEM on any TPU generation.
    out = pl.pallas_call(
        vision_fwd_kernel,
        out_shape=jax.ShapeDtypeStruct((B, SEQ, HIDDEN), jnp.float32),
        grid=(B,),
        in_specs=in_specs,
        out_specs=pl.BlockSpec((1, SEQ, HIDDEN), lambda b: (b, 0, 0)),
        scratch_shapes=[pltpu.VMEM((SEQ_PAD, HIDDEN), jnp.float32),   # x slab
                        pltpu.VMEM((SEQ_PAD, HIDDEN), jnp.float32)],  # head merge
        compiler_params=pltpu.CompilerParams(
            dimension_semantics=("parallel",),
            vmem_limit_bytes=48 * 1024 * 1024),   # v7x: 64 MiB physical, leave headroom
    )(patches, *weights)

    # last_hidden_state[:, 1:, :]  (CLS dropped; no post-layernorm on patch tokens)
    return out[:, 1:, :]


# ---------------- deterministic parameter init (layer-stacked, bf16 weights) ----------------
def init_params(key):
    def nrm(k, shape, std=0.02):
        return std * jax.random.normal(k, shape, dtype=jnp.float32)

    keys = jax.random.split(key, 7)
    bf16 = jnp.bfloat16

    # per-head QKV projection weights: (L, 3, HEADS, HIDDEN, HEAD_DIM)
    w_qkv = nrm(keys[3], (LAYERS, 3, HEADS, HIDDEN, HEAD_DIM))
    b_qkv = jnp.zeros((LAYERS, 3, HEADS, 1, HEAD_DIM), jnp.float32)
    # fold the attention scale into the Q projection (offline param prep)
    scale = HEAD_DIM ** -0.5
    w_qkv = w_qkv.at[:, 0].multiply(scale)
    b_qkv = b_qkv.at[:, 0].multiply(scale)
    w_qkv = w_qkv.reshape(LAYERS, 3 * HEADS, HIDDEN, HEAD_DIM)
    b_qkv = b_qkv.reshape(LAYERS, 3 * HEADS, 1, HEAD_DIM)

    return {
        # Conv2d weight [D, C, ph, pw] flattened + transposed -> (C*ph*pw, D)
        "w_patch": nrm(keys[0], (PATCH_DIM, HIDDEN)).astype(bf16),
        "class_emb": nrm(keys[1], (1, HIDDEN)),
        "pos_emb": nrm(keys[2], (SEQ, HIDDEN)),
        "pre_ln_g": jnp.ones((1, HIDDEN), jnp.float32),
        "pre_ln_b": jnp.zeros((1, HIDDEN), jnp.float32),
        # per-layer weights stacked along a leading L axis; matmul weights bf16
        "ln1_g": jnp.ones((LAYERS, 1, HIDDEN), jnp.float32),
        "ln1_b": jnp.zeros((LAYERS, 1, HIDDEN), jnp.float32),
        "w_qkv": w_qkv.astype(bf16),
        "b_qkv": b_qkv,
        "wo": nrm(keys[4], (LAYERS, HIDDEN, HIDDEN)).astype(bf16),
        "bo": jnp.zeros((LAYERS, 1, HIDDEN), jnp.float32),
        "ln2_g": jnp.ones((LAYERS, 1, HIDDEN), jnp.float32),
        "ln2_b": jnp.zeros((LAYERS, 1, HIDDEN), jnp.float32),
        "w1": nrm(keys[5], (LAYERS, HIDDEN, MLP)).astype(bf16),
        "b1": jnp.zeros((LAYERS, 1, MLP), jnp.float32),
        "w2": nrm(keys[6], (LAYERS, MLP, HIDDEN)).astype(bf16),
        "b2": jnp.zeros((LAYERS, 1, HIDDEN), jnp.float32),
    }


if __name__ == "__main__":
    key = jax.random.PRNGKey(0)
    pkey, xkey = jax.random.split(key)
    params = init_params(pkey)
    # synthetic "preprocessed" pixel values, NCHW like the PyTorch processor output
    pixel_values = jax.random.normal(xkey, (BATCH, CHANNELS, IMAGE, IMAGE),
                                     dtype=jnp.float32)

    fwd = jax.jit(vision_encoder_forward)
    out = jax.block_until_ready(fwd(pixel_values, params))
    assert out.shape == (BATCH, NUM_PATCHES, HIDDEN), out.shape
    assert bool(jnp.all(jnp.isfinite(out)))
    print("KERNEL_OK")
</pallas_src>

<mosaic_0001>
module attributes {stable_mosaic.version = 11 : i64} {
  func.func @vision_fwd_kernel(%arg0: i32, %arg1: memref<1x4x192xf32, #tpu.memory_space<vmem>>, %arg2: memref<192x32xbf16, #tpu.memory_space<vmem>>, %arg3: memref<1x32xf32, #tpu.memory_space<vmem>>, %arg4: memref<5x32xf32, #tpu.memory_space<vmem>>, %arg5: memref<1x32xf32, #tpu.memory_space<vmem>>, %arg6: memref<1x32xf32, #tpu.memory_space<vmem>>, %arg7: memref<2x1x32xf32, #tpu.memory_space<vmem>>, %arg8: memref<2x1x32xf32, #tpu.memory_space<vmem>>, %arg9: memref<2x12x32x8xbf16, #tpu.memory_space<vmem>>, %arg10: memref<2x12x1x8xf32, #tpu.memory_space<vmem>>, %arg11: memref<2x32x32xbf16, #tpu.memory_space<vmem>>, %arg12: memref<2x1x32xf32, #tpu.memory_space<vmem>>, %arg13: memref<2x1x32xf32, #tpu.memory_space<vmem>>, %arg14: memref<2x1x32xf32, #tpu.memory_space<vmem>>, %arg15: memref<2x32x64xbf16, #tpu.memory_space<vmem>>, %arg16: memref<2x1x64xf32, #tpu.memory_space<vmem>>, %arg17: memref<2x64x32xbf16, #tpu.memory_space<vmem>>, %arg18: memref<2x1x32xf32, #tpu.memory_space<vmem>>, %arg19: memref<1x5x32xf32, #tpu.memory_space<vmem>>, %arg20: memref<8x32xf32, #tpu.memory_space<vmem>>, %arg21: memref<8x32xf32, #tpu.memory_space<vmem>>) attributes {dimension_semantics = [#tpu.dimension_semantics<parallel>], iteration_bounds = array<i64: 2>, scalar_prefetch = 0 : i64, scratch_operands = 2 : i64, tpu.core_type = #tpu.core_type<tc>, window_params = [{transform_indices = @transform_0, window_bounds = array<i64: 1, 4, 192>}, {pipeline_mode = #tpu.pipeline_mode<synchronous>, transform_indices = @transform_1, window_bounds = array<i64: 192, 32>}, {pipeline_mode = #tpu.pipeline_mode<synchronous>, transform_indices = @transform_2, window_bounds = array<i64: 1, 32>}, {pipeline_mode = #tpu.pipeline_mode<synchronous>, transform_indices = @transform_3, window_bounds = array<i64: 5, 32>}, {pipeline_mode = #tpu.pipeline_mode<synchronous>, transform_indices = @transform_4, window_bounds = array<i64: 1, 32>}, {pipeline_mode = #tpu.pipeline_mode<synchronous>, transform_indices = @transform_5, window_bounds = array<i64: 1, 32>}, {pipeline_mode = #tpu.pipeline_mode<synchronous>, transform_indices = @transform_6, window_bounds = array<i64: 2, 1, 32>}, {pipeline_mode = #tpu.pipeline_mode<synchronous>, transform_indices = @transform_7, window_bounds = array<i64: 2, 1, 32>}, {pipeline_mode = #tpu.pipeline_mode<synchronous>, transform_indices = @transform_8, window_bounds = array<i64: 2, 12, 32, 8>}, {pipeline_mode = #tpu.pipeline_mode<synchronous>, transform_indices = @transform_9, window_bounds = array<i64: 2, 12, 1, 8>}, {pipeline_mode = #tpu.pipeline_mode<synchronous>, transform_indices = @transform_10, window_bounds = array<i64: 2, 32, 32>}, {pipeline_mode = #tpu.pipeline_mode<synchronous>, transform_indices = @transform_11, window_bounds = array<i64: 2, 1, 32>}, {pipeline_mode = #tpu.pipeline_mode<synchronous>, transform_indices = @transform_12, window_bounds = array<i64: 2, 1, 32>}, {pipeline_mode = #tpu.pipeline_mode<synchronous>, transform_indices = @transform_13, window_bounds = array<i64: 2, 1, 32>}, {pipeline_mode = #tpu.pipeline_mode<synchronous>, transform_indices = @transform_14, window_bounds = array<i64: 2, 32, 64>}, {pipeline_mode = #tpu.pipeline_mode<synchronous>, transform_indices = @transform_15, window_bounds = array<i64: 2, 1, 64>}, {pipeline_mode = #tpu.pipeline_mode<synchronous>, transform_indices = @transform_16, window_bounds = array<i64: 2, 64, 32>}, {pipeline_mode = #tpu.pipeline_mode<synchronous>, transform_indices = @transform_17, window_bounds = array<i64: 2, 1, 32>}, {transform_indices = @transform_18, window_bounds = array<i64: 1, 5, 32>}]} {
    %c0 = arith.constant 0 : index
    %c0_0 = arith.constant 0 : index
    %c0_1 = arith.constant 0 : index
    %0 = vector.load %arg1[%c0, %c0_0, %c0_1] : memref<1x4x192xf32, #tpu.memory_space<vmem>>, vector<1x4x192xf32>
    %1 = vector.shape_cast %0 : vector<1x4x192xf32> to vector<4x192xf32>
    %c0_2 = arith.constant 0 : index
    %c0_3 = arith.constant 0 : index
    %2 = vector.load %arg2[%c0_2, %c0_3] : memref<192x32xbf16, #tpu.memory_space<vmem>>, vector<192x32xbf16>
    %3 = arith.truncf %1 : vector<4x192xf32> to vector<4x192xbf16>
    %cst = arith.constant dense<0.000000e+00> : vector<4x32xf32>
    %4 = tpu.matmul %3, %2, %cst {dimension_numbers = #tpu.dot_dimension_numbers<[1], [0], [0], [1], [0, 0, 1, 1], [], []>} : vector<4x192xbf16>, vector<192x32xbf16>, vector<4x32xf32> -> vector<4x32xf32>
    %c0_4 = arith.constant 0 : index
    %c0_5 = arith.constant 0 : index
    %5 = vector.load %arg3[%c0_4, %c0_5] : memref<1x32xf32, #tpu.memory_space<vmem>>, vector<1x32xf32>
    %c0_6 = arith.constant 0 : index
    %c0_7 = arith.constant 0 : index
    %6 = vector.load %arg4[%c0_6, %c0_7] : memref<5x32xf32, #tpu.memory_space<vmem>>, vector<1x32xf32>
    %7 = arith.addf %5, %6 : vector<1x32xf32>
    %c0_8 = arith.constant 0 : index
    %c0_9 = arith.constant 0 : index
    %8 = vector.load %arg20[%c0_8, %c0_9] : memref<8x32xf32, #tpu.memory_space<vmem>>, vector<1x32xf32>
    tpu.vector_store %arg20[%c0_8, %c0_9], %7 {strides = array<i32>} : memref<8x32xf32, #tpu.memory_space<vmem>>, vector<1x32xf32>,
    %c1 = arith.constant 1 : index
    %c0_10 = arith.constant 0 : index
    %9 = vector.load %arg4[%c1, %c0_10] : memref<5x32xf32, #tpu.memory_space<vmem>>, vector<4x32xf32>
    %10 = arith.addf %4, %9 : vector<4x32xf32>
    %c1_11 = arith.constant 1 : index
    %c0_12 = arith.constant 0 : index
    %11 = vector.load %arg20[%c1_11, %c0_12] : memref<8x32xf32, #tpu.memory_space<vmem>>, vector<4x32xf32>
    tpu.vector_store %arg20[%c1_11, %c0_12], %10 {strides = array<i32>} : memref<8x32xf32, #tpu.memory_space<vmem>>, vector<4x32xf32>,
    %cst_13 = arith.constant 0.000000e+00 : f32
    %12 = vector.broadcast %cst_13 : f32 to vector<3x32xf32>
    %c5 = arith.constant 5 : index
    %c0_14 = arith.constant 0 : index
    %13 = vector.load %arg20[%c5, %c0_14] : memref<8x32xf32, #tpu.memory_space<vmem>>, vector<3x32xf32>
    tpu.vector_store %arg20[%c5, %c0_14], %12 {strides = array<i32>} : memref<8x32xf32, #tpu.memory_space<vmem>>, vector<3x32xf32>,
    %c0_15 = arith.constant 0 : index
    %c0_16 = arith.constant 0 : index
    %14 = vector.load %arg20[%c0_15, %c0_16] : memref<8x32xf32, #tpu.memory_space<vmem>>, vector<8x32xf32>
    %c0_17 = arith.constant 0 : index
    %c0_18 = arith.constant 0 : index
    %15 = vector.load %arg5[%c0_17, %c0_18] : memref<1x32xf32, #tpu.memory_space<vmem>>, vector<1x32xf32>
    %c0_19 = arith.constant 0 : index
    %c0_20 = arith.constant 0 : index
    %16 = vector.load %arg6[%c0_19, %c0_20] : memref<1x32xf32, #tpu.memory_space<vmem>>, vector<1x32xf32>
    %cst_21 = arith.constant dense<0.000000e+00> : vector<8xf32>
    %17 = vector.multi_reduction <add>, %14, %cst_21 [1] : vector<8x32xf32> to vector<8xf32>
    %18 = vector.shape_cast %17 : vector<8xf32> to vector<8x1xf32>
    %cst_22 = arith.constant 3.200000e+01 : f32
    %19 = vector.broadcast %cst_22 : f32 to vector<8x1xf32>
    %20 = arith.divf %18, %19 : vector<8x1xf32>
    %21 = vector.broadcast %20 : vector<8x1xf32> to vector<8x32xf32>
    %22 = arith.subf %14, %21 : vector<8x32xf32>
    %23 = arith.mulf %22, %22 : vector<8x32xf32>
    %cst_23 = arith.constant dense<0.000000e+00> : vector<8xf32>
    %24 = vector.multi_reduction <add>, %23, %cst_23 [1] : vector<8x32xf32> to vector<8xf32>
    %25 = vector.shape_cast %24 : vector<8xf32> to vector<8x1xf32>
    %cst_24 = arith.constant 3.200000e+01 : f32
    %26 = vector.broadcast %cst_24 : f32 to vector<8x1xf32>
    %27 = arith.divf %25, %26 : vector<8x1xf32>
    %28 = vector.broadcast %20 : vector<8x1xf32> to vector<8x32xf32>
    %29 = arith.subf %14, %28 : vector<8x32xf32>
    %cst_25 = arith.constant 9.99999974E-6 : f32
    %30 = vector.broadcast %cst_25 : f32 to vector<8x1xf32>
    %31 = arith.addf %27, %30 : vector<8x1xf32>
    %32 = math.rsqrt %31 : vector<8x1xf32>
    %33 = vector.broadcast %32 : vector<8x1xf32> to vector<8x32xf32>
    %34 = arith.mulf %29, %33 : vector<8x32xf32>
    %35 = vector.broadcast %15 : vector<1x32xf32> to vector<8x32xf32>
    %36 = arith.mulf %34, %35 : vector<8x32xf32>
    %37 = vector.broadcast %16 : vector<1x32xf32> to vector<8x32xf32>
    %38 = arith.addf %36, %37 : vector<8x32xf32>
    %39 = tpu.iota {dimensions = array<i32: 2>} : vector<1x1x8xi32>
    %c5_i32 = arith.constant 5 : i32
    %40 = vector.broadcast %c5_i32 : i32 to vector<1x1x8xi32>
    %41 = arith.cmpi slt, %39, %40 : vector<1x1x8xi32>
    %cst_26 = arith.constant 0.000000e+00 : f32
    %cst_27 = arith.constant -1.000000e+30 : f32
    %42 = vector.broadcast %cst_26 : f32 to vector<1x1x8xf32>
    %43 = vector.broadcast %cst_27 : f32 to vector<1x1x8xf32>
    %44 = arith.select %41, %42, %43 : vector<1x1x8xi1>, vector<1x1x8xf32>
    %c0_i32 = arith.constant 0 : i32
    %c2_i32 = arith.constant 2 : i32
    %45 = arith.addi %c0_i32, %c2_i32 : i32
    %c1_i32 = arith.constant 1 : i32
    %46 = scf.for %arg22 = %c0_i32 to %45 step %c1_i32 iter_args(%arg23 = %38) -> (vector<8x32xf32>)  : i32 {
      %51 = arith.index_cast %arg22 : i32 to index
      %c0_32 = arith.constant 0 : index
      %c0_33 = arith.constant 0 : index
      %52 = vector.load %arg7[%51, %c0_32, %c0_33] : memref<2x1x32xf32, #tpu.memory_space<vmem>>, vector<1x1x32xf32>
      %53 = vector.shape_cast %52 : vector<1x1x32xf32> to vector<1x32xf32>
      %54 = arith.index_cast %arg22 : i32 to index
      %c0_34 = arith.constant 0 : index
      %c0_35 = arith.constant 0 : index
      %55 = vector.load %arg8[%54, %c0_34, %c0_35] : memref<2x1x32xf32, #tpu.memory_space<vmem>>, vector<1x1x32xf32>
      %56 = vector.shape_cast %55 : vector<1x1x32xf32> to vector<1x32xf32>
      %cst_36 = arith.constant dense<0.000000e+00> : vector<8xf32>
      %57 = vector.multi_reduction <add>, %arg23, %cst_36 [1] : vector<8x32xf32> to vector<8xf32>
      %58 = vector.shape_cast %57 : vector<8xf32> to vector<8x1xf32>
      %cst_37 = arith.constant 3.200000e+01 : f32
      %59 = vector.broadcast %cst_37 : f32 to vector<8x1xf32>
      %60 = arith.divf %58, %59 : vector<8x1xf32>
      %61 = vector.broadcast %60 : vector<8x1xf32> to vector<8x32xf32>
      %62 = arith.subf %arg23, %61 : vector<8x32xf32>
      %63 = arith.mulf %62, %62 : vector<8x32xf32>
      %cst_38 = arith.constant dense<0.000000e+00> : vector<8xf32>
      %64 = vector.multi_reduction <add>, %63, %cst_38 [1] : vector<8x32xf32> to vector<8xf32>
      %65 = vector.shape_cast %64 : vector<8xf32> to vector<8x1xf32>
      %cst_39 = arith.constant 3.200000e+01 : f32
      %66 = vector.broadcast %cst_39 : f32 to vector<8x1xf32>
      %67 = arith.divf %65, %66 : vector<8x1xf32>
      %68 = vector.broadcast %60 : vector<8x1xf32> to vector<8x32xf32>
      %69 = arith.subf %arg23, %68 : vector<8x32xf32>
      %cst_40 = arith.constant 9.99999974E-6 : f32
      %70 = vector.broadcast %cst_40 : f32 to vector<8x1xf32>
      %71 = arith.addf %67, %70 : vector<8x1xf32>
      %72 = math.rsqrt %71 : vector<8x1xf32>
      %73 = vector.broadcast %72 : vector<8x1xf32> to vector<8x32xf32>
      %74 = arith.mulf %69, %73 : vector<8x32xf32>
      %75 = vector.broadcast %53 : vector<1x32xf32> to vector<8x32xf32>
      %76 = arith.mulf %74, %75 : vector<8x32xf32>
      %77 = vector.broadcast %56 : vector<1x32xf32> to vector<8x32xf32>
      %78 = arith.addf %76, %77 : vector<8x32xf32>
      %79 = arith.truncf %78 : vector<8x32xf32> to vector<8x32xbf16>
      %80 = vector.shape_cast %79 : vector<8x32xbf16> to vector<1x8x32xbf16>
      %81 = vector.shape_cast %80 : vector<1x8x32xbf16> to vector<1x8x32xbf16>
      %82 = vector.broadcast %81 : vector<1x8x32xbf16> to vector<4x8x32xbf16>
      %83 = arith.index_cast %arg22 : i32 to index
      %c0_41 = arith.constant 0 : index
      %c0_42 = arith.constant 0 : index
      %c0_43 = arith.constant 0 : index
      %84 = vector.load %arg9[%83, %c0_41, %c0_42, %c0_43] : memref<2x12x32x8xbf16, #tpu.memory_space<vmem>>, vector<1x12x32x8xbf16>
      %85 = vector.shape_cast %84 : vector<1x12x32x8xbf16> to vector<12x32x8xbf16>
      %86 = arith.index_cast %arg22 : i32 to index
      %c0_44 = arith.constant 0 : index
      %c0_45 = arith.constant 0 : index
      %c0_46 = arith.constant 0 : index
      %87 = vector.load %arg10[%86, %c0_44, %c0_45, %c0_46] : memref<2x12x1x8xf32, #tpu.memory_space<vmem>>, vector<1x12x1x8xf32>
      %88 = vector.shape_cast %87 : vector<1x12x1x8xf32> to vector<12x1x8xf32>
      %89 = vector.extract_strided_slice %85 {offsets = [0, 0, 0], sizes = [4, 32, 8], strides = [1, 1, 1]} : vector<12x32x8xbf16> to vector<4x32x8xbf16>
      "tpu.trace_start"() <{level = 10 : i32, message = "hsd,hdk->hsk"}> : () -> ()
      %cst_47 = arith.constant dense<0.000000e+00> : vector<4x8x8xf32>
      %90 = tpu.matmul %82, %89, %cst_47 {dimension_numbers = #tpu.dot_dimension_numbers<[2], [1], [1], [2], [0, 0, 0, 1, 1, 2], [0], [0]>} : vector<4x8x32xbf16>, vector<4x32x8xbf16>, vector<4x8x8xf32> -> vector<4x8x8xf32>
      "tpu.trace_stop"() : () -> ()
      %91 = vector.extract_strided_slice %88 {offsets = [0, 0, 0], sizes = [4, 1, 8], strides = [1, 1, 1]} : vector<12x1x8xf32> to vector<4x1x8xf32>
      %92 = vector.broadcast %91 : vector<4x1x8xf32> to vector<4x8x8xf32>
      %93 = arith.addf %90, %92 : vector<4x8x8xf32>
      %94 = vector.extract_strided_slice %85 {offsets = [4, 0, 0], sizes = [4, 32, 8], strides = [1, 1, 1]} : vector<12x32x8xbf16> to vector<4x32x8xbf16>
      "tpu.trace_start"() <{level = 10 : i32, message = "hsd,hdk->hsk"}> : () -> ()
      %cst_48 = arith.constant dense<0.000000e+00> : vector<4x8x8xf32>
      %95 = tpu.matmul %82, %94, %cst_48 {dimension_numbers = #tpu.dot_dimension_numbers<[2], [1], [1], [2], [0, 0, 0, 1, 1, 2], [0], [0]>} : vector<4x8x32xbf16>, vector<4x32x8xbf16>, vector<4x8x8xf32> -> vector<4x8x8xf32>
      "tpu.trace_stop"() : () -> ()
      %96 = vector.extract_strided_slice %88 {offsets = [4, 0, 0], sizes = [4, 1, 8], strides = [1, 1, 1]} : vector<12x1x8xf32> to vector<4x1x8xf32>
      %97 = vector.broadcast %96 : vector<4x1x8xf32> to vector<4x8x8xf32>
      %98 = arith.addf %95, %97 : vector<4x8x8xf32>
      %99 = vector.extract_strided_slice %85 {offsets = [8, 0, 0], sizes = [4, 32, 8], strides = [1, 1, 1]} : vector<12x32x8xbf16> to vector<4x32x8xbf16>
      "tpu.trace_start"() <{level = 10 : i32, message = "hsd,hdk->hsk"}> : () -> ()
      %cst_49 = arith.constant dense<0.000000e+00> : vector<4x8x8xf32>
      %100 = tpu.matmul %82, %99, %cst_49 {dimension_numbers = #tpu.dot_dimension_numbers<[2], [1], [1], [2], [0, 0, 0, 1, 1, 2], [0], [0]>} : vector<4x8x32xbf16>, vector<4x32x8xbf16>, vector<4x8x8xf32> -> vector<4x8x8xf32>
      "tpu.trace_stop"() : () -> ()
      %101 = vector.extract_strided_slice %88 {offsets = [8, 0, 0], sizes = [4, 1, 8], strides = [1, 1, 1]} : vector<12x1x8xf32> to vector<4x1x8xf32>
      %102 = vector.broadcast %101 : vector<4x1x8xf32> to vector<4x8x8xf32>
      %103 = arith.addf %100, %102 : vector<4x8x8xf32>
      %104 = arith.truncf %93 : vector<4x8x8xf32> to vector<4x8x8xbf16>
      %105 = arith.truncf %98 : vector<4x8x8xf32> to vector<4x8x8xbf16>
      "tpu.trace_start"() <{level = 10 : i32, message = "hsd,htd->hst"}> : () -> ()
      %cst_50 = arith.constant dense<0.000000e+00> : vector<4x8x8xf32>
      %106 = tpu.matmul %104, %105, %cst_50 {dimension_numbers = #tpu.dot_dimension_numbers<[2], [2], [1], [1], [0, 0, 0, 1, 1, 1], [0], [0]>} : vector<4x8x8xbf16>, vector<4x8x8xbf16>, vector<4x8x8xf32> -> vector<4x8x8xf32>
      "tpu.trace_stop"() : () -> ()
      %107 = vector.broadcast %44 : vector<1x1x8xf32> to vector<4x8x8xf32>
      %108 = arith.addf %106, %107 : vector<4x8x8xf32>
      %cst_51 = arith.constant dense<0xFF800000> : vector<4x8xf32>
      %109 = vector.multi_reduction <maximumf>, %108, %cst_51 [2] : vector<4x8x8xf32> to vector<4x8xf32>
      %110 = vector.shape_cast %109 : vector<4x8xf32> to vector<4x8x1xf32>
      %111 = vector.broadcast %110 : vector<4x8x1xf32> to vector<4x8x8xf32>
      %112 = arith.subf %108, %111 : vector<4x8x8xf32>
      %113 = math.exp %112 : vector<4x8x8xf32>
      %cst_52 = arith.constant dense<0.000000e+00> : vector<4x8xf32>
      %114 = vector.multi_reduction <add>, %113, %cst_52 [2] : vector<4x8x8xf32> to vector<4x8xf32>
      %115 = vector.shape_cast %114 : vector<4x8xf32> to vector<4x8x1xf32>
      %116 = tpu.reciprocal %115 {approx = true} : vector<4x8x1xf32> -> vector<4x8x1xf32>
      %117 = vector.broadcast %116 : vector<4x8x1xf32> to vector<4x8x8xf32>
      %118 = arith.mulf %113, %117 : vector<4x8x8xf32>
      %119 = arith.truncf %118 : vector<4x8x8xf32> to vector<4x8x8xbf16>
      %120 = arith.truncf %103 : vector<4x8x8xf32> to vector<4x8x8xbf16>
      "tpu.trace_start"() <{level = 10 : i32, message = "hst,htd->hsd"}> : () -> ()
      %cst_53 = arith.constant dense<0.000000e+00> : vector<4x8x8xf32>
      %121 = tpu.matmul %119, %120, %cst_53 {dimension_numbers = #tpu.dot_dimension_numbers<[2], [1], [1], [2], [0, 0, 0, 1, 1, 2], [0], [0]>} : vector<4x8x8xbf16>, vector<4x8x8xbf16>, vector<4x8x8xf32> -> vector<4x8x8xf32>
      "tpu.trace_stop"() : () -> ()
      %122 = vector.extract_strided_slice %121 {offsets = [0, 0, 0], sizes = [1, 8, 8], strides = [1, 1, 1]} : vector<4x8x8xf32> to vector<1x8x8xf32>
      %123 = vector.shape_cast %122 : vector<1x8x8xf32> to vector<8x8xf32>
      %c0_54 = arith.constant 0 : index
      %c0_55 = arith.constant 0 : index
      %124 = vector.load %arg21[%c0_54, %c0_55] : memref<8x32xf32, #tpu.memory_space<vmem>>, vector<8x8xf32>
      tpu.vector_store %arg21[%c0_54, %c0_55], %123 {strides = array<i32>} : memref<8x32xf32, #tpu.memory_space<vmem>>, vector<8x8xf32>,
      %125 = vector.extract_strided_slice %121 {offsets = [1, 0, 0], sizes = [1, 8, 8], strides = [1, 1, 1]} : vector<4x8x8xf32> to vector<1x8x8xf32>
      %126 = vector.shape_cast %125 : vector<1x8x8xf32> to vector<8x8xf32>
      %c0_56 = arith.constant 0 : index
      %c8 = arith.constant 8 : index
      %127 = vector.load %arg21[%c0_56, %c8] : memref<8x32xf32, #tpu.memory_space<vmem>>, vector<8x8xf32>
      tpu.vector_store %arg21[%c0_56, %c8], %126 {strides = array<i32>} : memref<8x32xf32, #tpu.memory_space<vmem>>, vector<8x8xf32>,
      %128 = vector.extract_strided_slice %121 {offsets = [2, 0, 0], sizes = [1, 8, 8], strides = [1, 1, 1]} : vector<4x8x8xf32> to vector<1x8x8xf32>
      %129 = vector.shape_cast %128 : vector<1x8x8xf32> to vector<8x8xf32>
      %c0_57 = arith.constant 0 : index
      %c16 = arith.constant 16 : index
      %130 = vector.load %arg21[%c0_57, %c16] : memref<8x32xf32, #tpu.memory_space<vmem>>, vector<8x8xf32>
      tpu.vector_store %arg21[%c0_57, %c16], %129 {strides = array<i32>} : memref<8x32xf32, #tpu.memory_space<vmem>>, vector<8x8xf32>,
      %131 = vector.extract_strided_slice %121 {offsets = [3, 0, 0], sizes = [1, 8, 8], strides = [1, 1, 1]} : vector<4x8x8xf32> to vector<1x8x8xf32>
      %132 = vector.shape_cast %131 : vector<1x8x8xf32> to vector<8x8xf32>
      %c0_58 = arith.constant 0 : index
      %c24 = arith.constant 24 : index
      %133 = vector.load %arg21[%c0_58, %c24] : memref<8x32xf32, #tpu.memory_space<vmem>>, vector<8x8xf32>
      tpu.vector_store %arg21[%c0_58, %c24], %132 {strides = array<i32>} : memref<8x32xf32, #tpu.memory_space<vmem>>, vector<8x8xf32>,
      %c0_59 = arith.constant 0 : index
      %c0_60 = arith.constant 0 : index
      %134 = vector.load %arg21[%c0_59, %c0_60] : memref<8x32xf32, #tpu.memory_space<vmem>>, vector<8x32xf32>
      %135 = arith.index_cast %arg22 : i32 to index
      %c0_61 = arith.constant 0 : index
      %c0_62 = arith.constant 0 : index
      %136 = vector.load %arg11[%135, %c0_61, %c0_62] : memref<2x32x32xbf16, #tpu.memory_space<vmem>>, vector<1x32x32xbf16>
      %137 = vector.shape_cast %136 : vector<1x32x32xbf16> to vector<32x32xbf16>
      %138 = arith.truncf %134 : vector<8x32xf32> to vector<8x32xbf16>
      %cst_63 = arith.constant dense<0.000000e+00> : vector<8x32xf32>
      %139 = tpu.matmul %138, %137, %cst_63 {dimension_numbers = #tpu.dot_dimension_numbers<[1], [0], [0], [1], [0, 0, 1, 1], [], []>} : vector<8x32xbf16>, vector<32x32xbf16>, vector<8x32xf32> -> vector<8x32xf32>
      %140 = arith.addf %arg23, %139 : vector<8x32xf32>
      %141 = arith.index_cast %arg22 : i32 to index
      %c0_64 = arith.constant 0 : index
      %c0_65 = arith.constant 0 : index
      %142 = vector.load %arg12[%141, %c0_64, %c0_65] : memref<2x1x32xf32, #tpu.memory_space<vmem>>, vector<1x1x32xf32>
      %143 = vector.shape_cast %142 : vector<1x1x32xf32> to vector<1x32xf32>
      %144 = vector.broadcast %143 : vector<1x32xf32> to vector<8x32xf32>
      %145 = arith.addf %140, %144 : vector<8x32xf32>
      %146 = arith.index_cast %arg22 : i32 to index
      %c0_66 = arith.constant 0 : index
      %c0_67 = arith.constant 0 : index
      %147 = vector.load %arg13[%146, %c0_66, %c0_67] : memref<2x1x32xf32, #tpu.memory_space<vmem>>, vector<1x1x32xf32>
      %148 = vector.shape_cast %147 : vector<1x1x32xf32> to vector<1x32xf32>
      %149 = arith.index_cast %arg22 : i32 to index
      %c0_68 = arith.constant 0 : index
      %c0_69 = arith.constant 0 : index
      %150 = vector.load %arg14[%149, %c0_68, %c0_69] : memref<2x1x32xf32, #tpu.memory_space<vmem>>, vector<1x1x32xf32>
      %151 = vector.shape_cast %150 : vector<1x1x32xf32> to vector<1x32xf32>
      %cst_70 = arith.constant dense<0.000000e+00> : vector<8xf32>
      %152 = vector.multi_reduction <add>, %145, %cst_70 [1] : vector<8x32xf32> to vector<8xf32>
      %153 = vector.shape_cast %152 : vector<8xf32> to vector<8x1xf32>
      %cst_71 = arith.constant 3.200000e+01 : f32
      %154 = vector.broadcast %cst_71 : f32 to vector<8x1xf32>
      %155 = arith.divf %153, %154 : vector<8x1xf32>
      %156 = vector.broadcast %155 : vector<8x1xf32> to vector<8x32xf32>
      %157 = arith.subf %145, %156 : vector<8x32xf32>
      %158 = arith.mulf %157, %157 : vector<8x32xf32>
      %cst_72 = arith.constant dense<0.000000e+00> : vector<8xf32>
      %159 = vector.multi_reduction <add>, %158, %cst_72 [1] : vector<8x32xf32> to vector<8xf32>
      %160 = vector.shape_cast %159 : vector<8xf32> to vector<8x1xf32>
      %cst_73 = arith.constant 3.200000e+01 : f32
      %161 = vector.broadcast %cst_73 : f32 to vector<8x1xf32>
      %162 = arith.divf %160, %161 : vector<8x1xf32>
      %163 = vector.broadcast %155 : vector<8x1xf32> to vector<8x32xf32>
      %164 = arith.subf %145, %163 : vector<8x32xf32>
      %cst_74 = arith.constant 9.99999974E-6 : f32
      %165 = vector.broadcast %cst_74 : f32 to vector<8x1xf32>
      %166 = arith.addf %162, %165 : vector<8x1xf32>
      %167 = math.rsqrt %166 : vector<8x1xf32>
      %168 = vector.broadcast %167 : vector<8x1xf32> to vector<8x32xf32>
      %169 = arith.mulf %164, %168 : vector<8x32xf32>
      %170 = vector.broadcast %148 : vector<1x32xf32> to vector<8x32xf32>
      %171 = arith.mulf %169, %170 : vector<8x32xf32>
      %172 = vector.broadcast %151 : vector<1x32xf32> to vector<8x32xf32>
      %173 = arith.addf %171, %172 : vector<8x32xf32>
      %174 = arith.index_cast %arg22 : i32 to index
      %c0_75 = arith.constant 0 : index
      %c0_76 = arith.constant 0 : index
      %175 = vector.load %arg15[%174, %c0_75, %c0_76] : memref<2x32x64xbf16, #tpu.memory_space<vmem>>, vector<1x32x64xbf16>
      %176 = vector.shape_cast %175 : vector<1x32x64xbf16> to vector<32x64xbf16>
      %177 = arith.truncf %173 : vector<8x32xf32> to vector<8x32xbf16>
      %cst_77 = arith.constant dense<0.000000e+00> : vector<8x64xf32>
      %178 = tpu.matmul %177, %176, %cst_77 {dimension_numbers = #tpu.dot_dimension_numbers<[1], [0], [0], [1], [0, 0, 1, 1], [], []>} : vector<8x32xbf16>, vector<32x64xbf16>, vector<8x64xf32> -> vector<8x64xf32>
      %179 = arith.index_cast %arg22 : i32 to index
      %c0_78 = arith.constant 0 : index
      %c0_79 = arith.constant 0 : index
      %180 = vector.load %arg16[%179, %c0_78, %c0_79] : memref<2x1x64xf32, #tpu.memory_space<vmem>>, vector<1x1x64xf32>
      %181 = vector.shape_cast %180 : vector<1x1x64xf32> to vector<1x64xf32>
      %182 = vector.broadcast %181 : vector<1x64xf32> to vector<8x64xf32>
      %183 = arith.addf %178, %182 : vector<8x64xf32>
      %cst_80 = arith.constant 1.702000e+00 : f32
      %184 = vector.broadcast %cst_80 : f32 to vector<8x64xf32>
      %185 = arith.mulf %184, %183 : vector<8x64xf32>
      %186 = arith.negf %185 : vector<8x64xf32>
      %187 = math.exp %186 : vector<8x64xf32>
      %cst_81 = arith.constant 1.000000e+00 : f32
      %188 = vector.broadcast %cst_81 : f32 to vector<8x64xf32>
      %189 = arith.addf %188, %187 : vector<8x64xf32>
      %190 = arith.divf %188, %189 : vector<8x64xf32>
      %191 = arith.mulf %183, %190 : vector<8x64xf32>
      %192 = arith.index_cast %arg22 : i32 to index
      %c0_82 = arith.constant 0 : index
      %c0_83 = arith.constant 0 : index
      %193 = vector.load %arg17[%192, %c0_82, %c0_83] : memref<2x64x32xbf16, #tpu.memory_space<vmem>>, vector<1x64x32xbf16>
      %194 = vector.shape_cast %193 : vector<1x64x32xbf16> to vector<64x32xbf16>
      %195 = arith.truncf %191 : vector<8x64xf32> to vector<8x64xbf16>
      %cst_84 = arith.constant dense<0.000000e+00> : vector<8x32xf32>
      %196 = tpu.matmul %195, %194, %cst_84 {dimension_numbers = #tpu.dot_dimension_numbers<[1], [0], [0], [1], [0, 0, 1, 1], [], []>} : vector<8x64xbf16>, vector<64x32xbf16>, vector<8x32xf32> -> vector<8x32xf32>
      %197 = arith.addf %145, %196 : vector<8x32xf32>
      %198 = arith.index_cast %arg22 : i32 to index
      %c0_85 = arith.constant 0 : index
      %c0_86 = arith.constant 0 : index
      %199 = vector.load %arg18[%198, %c0_85, %c0_86] : memref<2x1x32xf32, #tpu.memory_space<vmem>>, vector<1x1x32xf32>
      %200 = vector.shape_cast %199 : vector<1x1x32xf32> to vector<1x32xf32>
      %201 = vector.broadcast %200 : vector<1x32xf32> to vector<8x32xf32>
      %202 = arith.addf %197, %201 : vector<8x32xf32>
      scf.yield %202 : vector<8x32xf32>
    }
    %c2_i32_28 = arith.constant 2 : i32
    %47 = vector.extract_strided_slice %46 {offsets = [0, 0], sizes = [5, 32], strides = [1, 1]} : vector<8x32xf32> to vector<5x32xf32>
    %c0_29 = arith.constant 0 : index
    %c0_30 = arith.constant 0 : index
    %c0_31 = arith.constant 0 : index
    %48 = vector.load %arg19[%c0_29, %c0_30, %c0_31] : memref<1x5x32xf32, #tpu.memory_space<vmem>>, vector<1x5x32xf32>
    %49 = vector.shape_cast %48 : vector<1x5x32xf32> to vector<5x32xf32>
    %50 = vector.shape_cast %47 : vector<5x32xf32> to vector<1x5x32xf32>
    tpu.vector_store %arg19[%c0_29, %c0_30, %c0_31], %50 {strides = array<i32>} : memref<1x5x32xf32, #tpu.memory_space<vmem>>, vector<1x5x32xf32>,
    return
  }
  func.func @transform_0(%arg0: i32) -> (i32, i32, i32) {
    %c0_i32 = arith.constant 0 : i32
    %c0_i32_0 = arith.constant 0 : i32
    %c0_i32_1 = arith.constant 0 : i32
    return %arg0, %c0_i32, %c0_i32_0 : i32, i32, i32
  }
  func.func @transform_1(%arg0: i32) -> (i32, i32) {
    %c0_i32 = arith.constant 0 : i32
    %c0_i32_0 = arith.constant 0 : i32
    %c0_i32_1 = arith.constant 0 : i32
    return %c0_i32, %c0_i32_0 : i32, i32
  }
  func.func @transform_2(%arg0: i32) -> (i32, i32) {
    %c0_i32 = arith.constant 0 : i32
    %c0_i32_0 = arith.constant 0 : i32
    %c0_i32_1 = arith.constant 0 : i32
    return %c0_i32, %c0_i32_0 : i32, i32
  }
  func.func @transform_3(%arg0: i32) -> (i32, i32) {
    %c0_i32 = arith.constant 0 : i32
    %c0_i32_0 = arith.constant 0 : i32
    %c0_i32_1 = arith.constant 0 : i32
    return %c0_i32, %c0_i32_0 : i32, i32
  }
  func.func @transform_4(%arg0: i32) -> (i32, i32) {
    %c0_i32 = arith.constant 0 : i32
    %c0_i32_0 = arith.constant 0 : i32
    %c0_i32_1 = arith.constant 0 : i32
    return %c0_i32, %c0_i32_0 : i32, i32
  }
  func.func @transform_5(%arg0: i32) -> (i32, i32) {
    %c0_i32 = arith.constant 0 : i32
    %c0_i32_0 = arith.constant 0 : i32
    %c0_i32_1 = arith.constant 0 : i32
    return %c0_i32, %c0_i32_0 : i32, i32
  }
  func.func @transform_6(%arg0: i32) -> (i32, i32, i32) {
    %c0_i32 = arith.constant 0 : i32
    %c0_i32_0 = arith.constant 0 : i32
    %c0_i32_1 = arith.constant 0 : i32
    %c0_i32_2 = arith.constant 0 : i32
    return %c0_i32, %c0_i32_0, %c0_i32_1 : i32, i32, i32
  }
  func.func @transform_7(%arg0: i32) -> (i32, i32, i32) {
    %c0_i32 = arith.constant 0 : i32
    %c0_i32_0 = arith.constant 0 : i32
    %c0_i32_1 = arith.constant 0 : i32
    %c0_i32_2 = arith.constant 0 : i32
    return %c0_i32, %c0_i32_0, %c0_i32_1 : i32, i32, i32
  }
  func.func @transform_8(%arg0: i32) -> (i32, i32, i32, i32) {
    %c0_i32 = arith.constant 0 : i32
    %c0_i32_0 = arith.constant 0 : i32
    %c0_i32_1 = arith.constant 0 : i32
    %c0_i32_2 = arith.constant 0 : i32
    %c0_i32_3 = arith.constant 0 : i32
    return %c0_i32, %c0_i32_0, %c0_i32_1, %c0_i32_2 : i32, i32, i32, i32
  }
  func.func @transform_9(%arg0: i32) -> (i32, i32, i32, i32) {
    %c0_i32 = arith.constant 0 : i32
    %c0_i32_0 = arith.constant 0 : i32
    %c0_i32_1 = arith.constant 0 : i32
    %c0_i32_2 = arith.constant 0 : i32
    %c0_i32_3 = arith.constant 0 : i32
    return %c0_i32, %c0_i32_0, %c0_i32_1, %c0_i32_2 : i32, i32, i32, i32
  }
  func.func @transform_10(%arg0: i32) -> (i32, i32, i32) {
    %c0_i32 = arith.constant 0 : i32
    %c0_i32_0 = arith.constant 0 : i32
    %c0_i32_1 = arith.constant 0 : i32
    %c0_i32_2 = arith.constant 0 : i32
    return %c0_i32, %c0_i32_0, %c0_i32_1 : i32, i32, i32
  }
  func.func @transform_11(%arg0: i32) -> (i32, i32, i32) {
    %c0_i32 = arith.constant 0 : i32
    %c0_i32_0 = arith.constant 0 : i32
    %c0_i32_1 = arith.constant 0 : i32
    %c0_i32_2 = arith.constant 0 : i32
    return %c0_i32, %c0_i32_0, %c0_i32_1 : i32, i32, i32
  }
  func.func @transform_12(%arg0: i32) -> (i32, i32, i32) {
    %c0_i32 = arith.constant 0 : i32
    %c0_i32_0 = arith.constant 0 : i32
    %c0_i32_1 = arith.constant 0 : i32
    %c0_i32_2 = arith.constant 0 : i32
    return %c0_i32, %c0_i32_0, %c0_i32_1 : i32, i32, i32
  }
  func.func @transform_13(%arg0: i32) -> (i32, i32, i32) {
    %c0_i32 = arith.constant 0 : i32
    %c0_i32_0 = arith.constant 0 : i32
    %c0_i32_1 = arith.constant 0 : i32
    %c0_i32_2 = arith.constant 0 : i32
    return %c0_i32, %c0_i32_0, %c0_i32_1 : i32, i32, i32
  }
  func.func @transform_14(%arg0: i32) -> (i32, i32, i32) {
    %c0_i32 = arith.constant 0 : i32
    %c0_i32_0 = arith.constant 0 : i32
    %c0_i32_1 = arith.constant 0 : i32
    %c0_i32_2 = arith.constant 0 : i32
    return %c0_i32, %c0_i32_0, %c0_i32_1 : i32, i32, i32
  }
  func.func @transform_15(%arg0: i32) -> (i32, i32, i32) {
    %c0_i32 = arith.constant 0 : i32
    %c0_i32_0 = arith.constant 0 : i32
    %c0_i32_1 = arith.constant 0 : i32
    %c0_i32_2 = arith.constant 0 : i32
    return %c0_i32, %c0_i32_0, %c0_i32_1 : i32, i32, i32
  }
  func.func @transform_16(%arg0: i32) -> (i32, i32, i32) {
    %c0_i32 = arith.constant 0 : i32
    %c0_i32_0 = arith.constant 0 : i32
    %c0_i32_1 = arith.constant 0 : i32
    %c0_i32_2 = arith.constant 0 : i32
    return %c0_i32, %c0_i32_0, %c0_i32_1 : i32, i32, i32
  }
  func.func @transform_17(%arg0: i32) -> (i32, i32, i32) {
    %c0_i32 = arith.constant 0 : i32
    %c0_i32_0 = arith.constant 0 : i32
    %c0_i32_1 = arith.constant 0 : i32
    %c0_i32_2 = arith.constant 0 : i32
    return %c0_i32, %c0_i32_0, %c0_i32_1 : i32, i32, i32
  }
  func.func @transform_18(%arg0: i32) -> (i32, i32, i32) {
    %c0_i32 = arith.constant 0 : i32
    %c0_i32_0 = arith.constant 0 : i32
    %c0_i32_1 = arith.constant 0 : i32
    return %arg0, %c0_i32, %c0_i32_0 : i32, i32, i32
  }
}

</mosaic_0001>

<llo_original>
// kernel: vision_encoder_forward.1
$region0: #{vision_encoder_forward.1}
  #allocation0 [shape = 'u32[]', space=smem, size = 0x4, offset = 0x4, fixed_abs, tag = 'smem constant byte address 0x4 - core index']
  #allocation1 [shape = 'u32[144,128]{1,0:T(1,128)}', space=vmem, size = 0x12000, scoped, tag = 'internal scratch']
  #allocation2 [shape = 'f32[8,32]{1,0:T(8,128)}', space=vmem, size = 0x1000, scoped, tag = 'scratch operand']
  #allocation3 [shape = 'f32[8,32]{1,0:T(8,128)}', space=vmem, size = 0x1000, scoped, tag = 'scratch operand']
  %s0 = inlined_call_operand.vmem [shape: f32[2,4,192], index: 0, kind: input, shape index: {}]
  %s1 = inlined_call_operand.vmem [shape: bf16[192,32], index: 1, kind: input, shape index: {}]
  %s2 = inlined_call_operand.vmem [shape: f32[1,32], index: 2, kind: input, shape index: {}]
  %s3 = inlined_call_operand.vmem [shape: f32[5,32], index: 3, kind: input, shape index: {}]
  %s4 = inlined_call_operand.vmem [shape: f32[1,32], index: 4, kind: input, shape index: {}]
  %s5 = inlined_call_operand.vmem [shape: f32[1,32], index: 5, kind: input, shape index: {}]
  %s6 = inlined_call_operand.vmem [shape: f32[2,1,32], index: 6, kind: input, shape index: {}]
  %s7 = inlined_call_operand.vmem [shape: f32[2,1,32], index: 7, kind: input, shape index: {}]
  %s8 = inlined_call_operand.vmem [shape: bf16[2,12,32,8], index: 8, kind: input, shape index: {}]
  %s9 = inlined_call_operand.vmem [shape: f32[2,12,1,8], index: 9, kind: input, shape index: {}]
  %s10 = inlined_call_operand.vmem [shape: bf16[2,32,32], index: 10, kind: input, shape index: {}]
  %s11 = inlined_call_operand.vmem [shape: f32[2,1,32], index: 11, kind: input, shape index: {}]
  %s12 = inlined_call_operand.vmem [shape: f32[2,1,32], index: 12, kind: input, shape index: {}]
  %s13 = inlined_call_operand.vmem [shape: f32[2,1,32], index: 13, kind: input, shape index: {}]
  %s14 = inlined_call_operand.vmem [shape: bf16[2,32,64], index: 14, kind: input, shape index: {}]
  %s15 = inlined_call_operand.vmem [shape: f32[2,1,64], index: 15, kind: input, shape index: {}]
  %s16 = inlined_call_operand.vmem [shape: bf16[2,64,32], index: 16, kind: input, shape index: {}]
  %s17 = inlined_call_operand.vmem [shape: f32[2,1,32], index: 17, kind: input, shape index: {}]
  %s18 = inlined_call_operand.vmem [shape: f32[2,5,32], index: 18, kind: output, shape index: {}]
  %s19 = sld [smem:[#allocation0]]
  $region112: #{vision_encoder_forward.1} parent=0
    _
  %s21 = ssub.s32 1, %s19
  %s22 = scalar_select 0, %s21, %s19
  loop: start=0, step=1, limit=4
  $region2: #{vision_encoder_forward.1} parent=0 // loop_pre_header
    _
  $region3: #{vision_encoder_forward.1} parent=0 // loop_header
    %s24 = sphi 0, %s28
    %p25 = scmp.ge.s32.totalorder %s24, 4
    %s34 = sphi 0, %s36
    %s37 = sphi 0, %s34
    %s38 = sphi 0, %s37
    %s54 = sphi 0, %s38
    %s58 = sphi 0, %s58
    %s60 = sphi 0, %s58
    %s61 = sphi 0, %s60
    %s75 = sphi 0, %s61
    %s79 = sphi 0, %s79
    %s81 = sphi 0, %s79
    %s82 = sphi 0, %s81
    %s96 = sphi 0, %s82
    %s100 = sphi 0, %s100
    %s102 = sphi 0, %s100
    %s103 = sphi 0, %s102
    %s117 = sphi 0, %s103
    %s121 = sphi 0, %s121
    %s123 = sphi 0, %s121
    %s124 = sphi 0, %s123
    %s138 = sphi 0, %s124
    %s142 = sphi 0, %s142
    %s144 = sphi 0, %s142
    %s145 = sphi 0, %s144
    %s159 = sphi 0, %s145
    %s163 = sphi 0, %s163
    %s165 = sphi 0, %s163
    %s166 = sphi 0, %s165
    %s180 = sphi 0, %s166
    %s184 = sphi 0, %s184
    %s186 = sphi 0, %s184
    %s187 = sphi 0, %s186
    %s201 = sphi 0, %s187
    %s205 = sphi 0, %s205
    %s207 = sphi 0, %s205
    %s208 = sphi 0, %s207
    %s222 = sphi 0, %s208
    %s226 = sphi 0, %s226
    %s228 = sphi 0, %s226
    %s229 = sphi 0, %s228
    %s243 = sphi 0, %s229
    %s247 = sphi 0, %s247
    %s249 = sphi 0, %s247
    %s250 = sphi 0, %s249
    %s264 = sphi 0, %s250
    %s268 = sphi 0, %s268
    %s270 = sphi 0, %s268
    %s271 = sphi 0, %s270
    %s285 = sphi 0, %s271
    %s289 = sphi 0, %s289
    %s291 = sphi 0, %s289
    %s292 = sphi 0, %s291
    %s306 = sphi 0, %s292
    %s310 = sphi 0, %s310
    %s312 = sphi 0, %s310
    %s313 = sphi 0, %s312
    %s327 = sphi 0, %s313
    %s331 = sphi 0, %s331
    %s333 = sphi 0, %s331
    %s334 = sphi 0, %s333
    %s348 = sphi 0, %s334
    %s352 = sphi 0, %s352
    %s354 = sphi 0, %s352
    %s355 = sphi 0, %s354
    %s369 = sphi 0, %s355
    %s373 = sphi 0, %s373
    %s375 = sphi 0, %s373
    %s376 = sphi 0, %s375
    %s390 = sphi 0, %s376
    %s394 = sphi 0, %s394
    %s396 = sphi 0, %s394
    %s397 = sphi 0, %s396
    %s411 = sphi 0, %s397
    %s417 = sphi 0, %s419
    %s420 = sphi 0, %s417
    %s421 = sphi 0, %s420
    %s437 = sphi 0, %s421
  $region4: #{vision_encoder_forward.1} parent=0 // loop_header_branch
    %27 = sbr.rel (%p25) target = $region8
  $region5: #{vision_encoder_forward.1} parent=0 // loop_body
    %s29 = ssub.s32 %s24, 1
    %s30 = ssub.s32 %s24, 2
    %s31 = sadd.s32 %s24, 1
    %s32 = ssub.s32 %s24, %s31
    %p33 = scmp.eq.s32.totalorder %s32, 0
    %s35 = sadd.s32 %s34, 1
    %s36 = scalar_select %p33, %s34, %s35
    %p39 = pneg %p33
    %p40 = scmp.eq.s32.totalorder %s24, 1
    %p41 = por %p39, %p40
    %p42 = scmp.ne.s32.totalorder %s34, %s37
    %p43 = scmp.eq.s32.totalorder %s24, 0
    %p44 = por %p42, %p43
    %p45 = scmp.ne.s32.totalorder %s34, %s37
    %p46 = scmp.eq.s32.totalorder %s29, 1
    %p47 = por %p45, %p46
    %p48 = scmp.ne.s32.totalorder %s37, %s38
    %p49 = scmp.eq.s32.totalorder %s29, 0
    %p50 = por %p48, %p49
    %p51 = scmp.ne.s32.totalorder %s37, %s38
    %p52 = scmp.eq.s32.totalorder %s30, 1
    %p53 = por %p51, %p52
    %p55 = scmp.ne.s32.totalorder %s38, %s54
    %p56 = scmp.eq.s32.totalorder %s30, 0
    %p57 = por %p55, %p56
    %s59 = sadd.s32 %s58, 1
    %p62 = scmp.eq.s32.totalorder %s24, 1
    %p63 = scmp.ne.s32.totalorder %s58, %s60
    %p64 = scmp.eq.s32.totalorder %s24, 0
    %p65 = por %p63, %p64
    %p66 = scmp.ne.s32.totalorder %s58, %s60
    %p67 = scmp.eq.s32.totalorder %s29, 1
    %p68 = por %p66, %p67
    %p69 = scmp.ne.s32.totalorder %s60, %s61
    %p70 = scmp.eq.s32.totalorder %s29, 0
    %p71 = por %p69, %p70
    %p72 = scmp.ne.s32.totalorder %s60, %s61
    %p73 = scmp.eq.s32.totalorder %s30, 1
    %p74 = por %p72, %p73
    %p76 = scmp.ne.s32.totalorder %s61, %s75
    %p77 = scmp.eq.s32.totalorder %s30, 0
    %p78 = por %p76, %p77
    %s80 = sadd.s32 %s79, 1
    %p83 = scmp.eq.s32.totalorder %s24, 1
    %p84 = scmp.ne.s32.totalorder %s79, %s81
    %p85 = scmp.eq.s32.totalorder %s24, 0
    %p86 = por %p84, %p85
    %p87 = scmp.ne.s32.totalorder %s79, %s81
    %p88 = scmp.eq.s32.totalorder %s29, 1
    %p89 = por %p87, %p88
    %p90 = scmp.ne.s32.totalorder %s81, %s82
    %p91 = scmp.eq.s32.totalorder %s29, 0
    %p92 = por %p90, %p91
    %p93 = scmp.ne.s32.totalorder %s81, %s82
    %p94 = scmp.eq.s32.totalorder %s30, 1
    %p95 = por %p93, %p94
    %p97 = scmp.ne.s32.totalorder %s82, %s96
    %p98 = scmp.eq.s32.totalorder %s30, 0
    %p99 = por %p97, %p98
    %s101 = sadd.s32 %s100, 1
    %p104 = scmp.eq.s32.totalorder %s24, 1
    %p105 = scmp.ne.s32.totalorder %s100, %s102
    %p106 = scmp.eq.s32.totalorder %s24, 0
    %p107 = por %p105, %p106
    %p108 = scmp.ne.s32.totalorder %s100, %s102
    %p109 = scmp.eq.s32.totalorder %s29, 1
    %p110 = por %p108, %p109
    %p111 = scmp.ne.s32.totalorder %s102, %s103
    %p112 = scmp.eq.s32.totalorder %s29, 0
    %p113 = por %p111, %p112
    %p114 = scmp.ne.s32.totalorder %s102, %s103
    %p115 = scmp.eq.s32.totalorder %s30, 1
    %p116 = por %p114, %p115
    %p118 = scmp.ne.s32.totalorder %s103, %s117
    %p119 = scmp.eq.s32.totalorder %s30, 0
    %p120 = por %p118, %p119
    %s122 = sadd.s32 %s121, 1
    %p125 = scmp.eq.s32.totalorder %s24, 1
    %p126 = scmp.ne.s32.totalorder %s121, %s123
    %p127 = scmp.eq.s32.totalorder %s24, 0
    %p128 = por %p126, %p127
    %p129 = scmp.ne.s32.totalorder %s121, %s123
    %p130 = scmp.eq.s32.totalorder %s29, 1
    %p131 = por %p129, %p130
    %p132 = scmp.ne.s32.totalorder %s123, %s124
    %p133 = scmp.eq.s32.totalorder %s29, 0
    %p134 = por %p132, %p133
    %p135 = scmp.ne.s32.totalorder %s123, %s124
    %p136 = scmp.eq.s32.totalorder %s30, 1
    %p137 = por %p135, %p136
    %p139 = scmp.ne.s32.totalorder %s124, %s138
    %p140 = scmp.eq.s32.totalorder %s30, 0
    %p141 = por %p139, %p140
    %s143 = sadd.s32 %s142, 1
    %p146 = scmp.eq.s32.totalorder %s24, 1
    %p147 = scmp.ne.s32.totalorder %s142, %s144
    %p148 = scmp.eq.s32.totalorder %s24, 0
    %p149 = por %p147, %p148
    %p150 = scmp.ne.s32.totalorder %s142, %s144
    %p151 = scmp.eq.s32.totalorder %s29, 1
    %p152 = por %p150, %p151
    %p153 = scmp.ne.s32.totalorder %s144, %s145
    %p154 = scmp.eq.s32.totalorder %s29, 0
    %p155 = por %p153, %p154
    %p156 = scmp.ne.s32.totalorder %s144, %s145
    %p157 = scmp.eq.s32.totalorder %s30, 1
    %p158 = por %p156, %p157
    %p160 = scmp.ne.s32.totalorder %s145, %s159
    %p161 = scmp.eq.s32.totalorder %s30, 0
    %p162 = por %p160, %p161
    %s164 = sadd.s32 %s163, 1
    %p167 = scmp.eq.s32.totalorder %s24, 1
    %p168 = scmp.ne.s32.totalorder %s163, %s165
    %p169 = scmp.eq.s32.totalorder %s24, 0
    %p170 = por %p168, %p169
    %p171 = scmp.ne.s32.totalorder %s163, %s165
    %p172 = scmp.eq.s32.totalorder %s29, 1
    %p173 = por %p171, %p172
    %p174 = scmp.ne.s32.totalorder %s165, %s166
    %p175 = scmp.eq.s32.totalorder %s29, 0
    %p176 = por %p174, %p175
    %p177 = scmp.ne.s32.totalorder %s165, %s166
    %p178 = scmp.eq.s32.totalorder %s30, 1
    %p179 = por %p177, %p178
    %p181 = scmp.ne.s32.totalorder %s166, %s180
    %p182 = scmp.eq.s32.totalorder %s30, 0
    %p183 = por %p181, %p182
    %s185 = sadd.s32 %s184, 1
    %p188 = scmp.eq.s32.totalorder %s24, 1
    %p189 = scmp.ne.s32.totalorder %s184, %s186
    %p190 = scmp.eq.s32.totalorder %s24, 0
    %p191 = por %p189, %p190
    %p192 = scmp.ne.s32.totalorder %s184, %s186
    %p193 = scmp.eq.s32.totalorder %s29, 1
    %p194 = por %p192, %p193
    %p195 = scmp.ne.s32.totalorder %s186, %s187
    %p196 = scmp.eq.s32.totalorder %s29, 0
    %p197 = por %p195, %p196
    %p198 = scmp.ne.s32.totalorder %s186, %s187
    %p199 = scmp.eq.s32.totalorder %s30, 1
    %p200 = por %p198, %p199
    %p202 = scmp.ne.s32.totalorder %s187, %s201
    %p203 = scmp.eq.s32.totalorder %s30, 0
    %p204 = por %p202, %p203
    %s206 = sadd.s32 %s205, 1
    %p209 = scmp.eq.s32.totalorder %s24, 1
    %p210 = scmp.ne.s32.totalorder %s205, %s207
    %p211 = scmp.eq.s32.totalorder %s24, 0
    %p212 = por %p210, %p211
    %p213 = scmp.ne.s32.totalorder %s205, %s207
    %p214 = scmp.eq.s32.totalorder %s29, 1
    %p215 = por %p213, %p214
    %p216 = scmp.ne.s32.totalorder %s207, %s208
    %p217 = scmp.eq.s32.totalorder %s29, 0
    %p218 = por %p216, %p217
    %p219 = scmp.ne.s32.totalorder %s207, %s208
    %p220 = scmp.eq.s32.totalorder %s30, 1
    %p221 = por %p219, %p220
    %p223 = scmp.ne.s32.totalorder %s208, %s222
    %p224 = scmp.eq.s32.totalorder %s30, 0
    %p225 = por %p223, %p224
    %s227 = sadd.s32 %s226, 1
    %p230 = scmp.eq.s32.totalorder %s24, 1
    %p231 = scmp.ne.s32.totalorder %s226, %s228
    %p232 = scmp.eq.s32.totalorder %s24, 0
    %p233 = por %p231, %p232
    %p234 = scmp.ne.s32.totalorder %s226, %s228
    %p235 = scmp.eq.s32.totalorder %s29, 1
    %p236 = por %p234, %p235
    %p237 = scmp.ne.s32.totalorder %s228, %s229
    %p238 = scmp.eq.s32.totalorder %s29, 0
    %p239 = por %p237, %p238
    %p240 = scmp.ne.s32.totalorder %s228, %s229
    %p241 = scmp.eq.s32.totalorder %s30, 1
    %p242 = por %p240, %p241
    %p244 = scmp.ne.s32.totalorder %s229, %s243
    %p245 = scmp.eq.s32.totalorder %s30, 0
    %p246 = por %p244, %p245
    %s248 = sadd.s32 %s247, 1
    %p251 = scmp.eq.s32.totalorder %s24, 1
    %p252 = scmp.ne.s32.totalorder %s247, %s249
    %p253 = scmp.eq.s32.totalorder %s24, 0
    %p254 = por %p252, %p253
    %p255 = scmp.ne.s32.totalorder %s247, %s249
    %p256 = scmp.eq.s32.totalorder %s29, 1
    %p257 = por %p255, %p256
    %p258 = scmp.ne.s32.totalorder %s249, %s250
    %p259 = scmp.eq.s32.totalorder %s29, 0
    %p260 = por %p258, %p259
    %p261 = scmp.ne.s32.totalorder %s249, %s250
    %p262 = scmp.eq.s32.totalorder %s30, 1
    %p263 = por %p261, %p262
    %p265 = scmp.ne.s32.totalorder %s250, %s264
    %p266 = scmp.eq.s32.totalorder %s30, 0
    %p267 = por %p265, %p266
    %s269 = sadd.s32 %s268, 1
    %p272 = scmp.eq.s32.totalorder %s24, 1
    %p273 = scmp.ne.s32.totalorder %s268, %s270
    %p274 = scmp.eq.s32.totalorder %s24, 0
    %p275 = por %p273, %p274
    %p276 = scmp.ne.s32.totalorder %s268, %s270
    %p277 = scmp.eq.s32.totalorder %s29, 1
    %p278 = por %p276, %p277
    %p279 = scmp.ne.s32.totalorder %s270, %s271
    %p280 = scmp.eq.s32.totalorder %s29, 0
    %p281 = por %p279, %p280
    %p282 = scmp.ne.s32.totalorder %s270, %s271
    %p283 = scmp.eq.s32.totalorder %s30, 1
    %p284 = por %p282, %p283
    %p286 = scmp.ne.s32.totalorder %s271, %s285
    %p287 = scmp.eq.s32.totalorder %s30, 0
    %p288 = por %p286, %p287
    %s290 = sadd.s32 %s289, 1
    %p293 = scmp.eq.s32.totalorder %s24, 1
    %p294 = scmp.ne.s32.totalorder %s289, %s291
    %p295 = scmp.eq.s32.totalorder %s24, 0
    %p296 = por %p294, %p295
    %p297 = scmp.ne.s32.totalorder %s289, %s291
    %p298 = scmp.eq.s32.totalorder %s29, 1
    %p299 = por %p297, %p298
    %p300 = scmp.ne.s32.totalorder %s291, %s292
    %p301 = scmp.eq.s32.totalorder %s29, 0
    %p302 = por %p300, %p301
    %p303 = scmp.ne.s32.totalorder %s291, %s292
    %p304 = scmp.eq.s32.totalorder %s30, 1
    %p305 = por %p303, %p304
    %p307 = scmp.ne.s32.totalorder %s292, %s306
    %p308 = scmp.eq.s32.totalorder %s30, 0
    %p309 = por %p307, %p308
    %s311 = sadd.s32 %s310, 1
    %p314 = scmp.eq.s32.totalorder %s24, 1
    %p315 = scmp.ne.s32.totalorder %s310, %s312
    %p316 = scmp.eq.s32.totalorder %s24, 0
    %p317 = por %p315, %p316
    %p318 = scmp.ne.s32.totalorder %s310, %s312
    %p319 = scmp.eq.s32.totalorder %s29, 1
    %p320 = por %p318, %p319
    %p321 = scmp.ne.s32.totalorder %s312, %s313
    %p322 = scmp.eq.s32.totalorder %s29, 0
    %p323 = por %p321, %p322
    %p324 = scmp.ne.s32.totalorder %s312, %s313
    %p325 = scmp.eq.s32.totalorder %s30, 1
    %p326 = por %p324, %p325
    %p328 = scmp.ne.s32.totalorder %s313, %s327
    %p329 = scmp.eq.s32.totalorder %s30, 0
    %p330 = por %p328, %p329
    %s332 = sadd.s32 %s331, 1
    %p335 = scmp.eq.s32.totalorder %s24, 1
    %p336 = scmp.ne.s32.totalorder %s331, %s333
    %p337 = scmp.eq.s32.totalorder %s24, 0
    %p338 = por %p336, %p337
    %p339 = scmp.ne.s32.totalorder %s331, %s333
    %p340 = scmp.eq.s32.totalorder %s29, 1
    %p341 = por %p339, %p340
    %p342 = scmp.ne.s32.totalorder %s333, %s334
    %p343 = scmp.eq.s32.totalorder %s29, 0
    %p344 = por %p342, %p343
    %p345 = scmp.ne.s32.totalorder %s333, %s334
    %p346 = scmp.eq.s32.totalorder %s30, 1
    %p347 = por %p345, %p346
    %p349 = scmp.ne.s32.totalorder %s334, %s348
    %p350 = scmp.eq.s32.totalorder %s30, 0
    %p351 = por %p349, %p350
    %s353 = sadd.s32 %s352, 1
    %p356 = scmp.eq.s32.totalorder %s24, 1
    %p357 = scmp.ne.s32.totalorder %s352, %s354
    %p358 = scmp.eq.s32.totalorder %s24, 0
    %p359 = por %p357, %p358
    %p360 = scmp.ne.s32.totalorder %s352, %s354
    %p361 = scmp.eq.s32.totalorder %s29, 1
    %p362 = por %p360, %p361
    %p363 = scmp.ne.s32.totalorder %s354, %s355
    %p364 = scmp.eq.s32.totalorder %s29, 0
    %p365 = por %p363, %p364
    %p366 = scmp.ne.s32.totalorder %s354, %s355
    %p367 = scmp.eq.s32.totalorder %s30, 1
    %p368 = por %p366, %p367
    %p370 = scmp.ne.s32.totalorder %s355, %s369
    %p371 = scmp.eq.s32.totalorder %s30, 0
    %p372 = por %p370, %p371
    %s374 = sadd.s32 %s373, 1
    %p377 = scmp.eq.s32.totalorder %s24, 1
    %p378 = scmp.ne.s32.totalorder %s373, %s375
    %p379 = scmp.eq.s32.totalorder %s24, 0
    %p380 = por %p378, %p379
    %p381 = scmp.ne.s32.totalorder %s373, %s375
    %p382 = scmp.eq.s32.totalorder %s29, 1
    %p383 = por %p381, %p382
    %p384 = scmp.ne.s32.totalorder %s375, %s376
    %p385 = scmp.eq.s32.totalorder %s29, 0
    %p386 = por %p384, %p385
    %p387 = scmp.ne.s32.totalorder %s375, %s376
    %p388 = scmp.eq.s32.totalorder %s30, 1
    %p389 = por %p387, %p388
    %p391 = scmp.ne.s32.totalorder %s376, %s390
    %p392 = scmp.eq.s32.totalorder %s30, 0
    %p393 = por %p391, %p392
    %s395 = sadd.s32 %s394, 1
    %p398 = scmp.eq.s32.totalorder %s24, 1
    %p399 = scmp.ne.s32.totalorder %s394, %s396
    %p400 = scmp.eq.s32.totalorder %s24, 0
    %p401 = por %p399, %p400
    %p402 = scmp.ne.s32.totalorder %s394, %s396
    %p403 = scmp.eq.s32.totalorder %s29, 1
    %p404 = por %p402, %p403
    %p405 = scmp.ne.s32.totalorder %s396, %s397
    %p406 = scmp.eq.s32.totalorder %s29, 0
    %p407 = por %p405, %p406
    %p408 = scmp.ne.s32.totalorder %s396, %s397
    %p409 = scmp.eq.s32.totalorder %s30, 1
    %p410 = por %p408, %p409
    %p412 = scmp.ne.s32.totalorder %s397, %s411
    %p413 = scmp.eq.s32.totalorder %s30, 0
    %p414 = por %p412, %p413
    %s415 = ssub.s32 %s24, %s31
    %p416 = scmp.eq.s32.totalorder %s415, 0
    %s418 = sadd.s32 %s417, 1
    %s419 = scalar_select %p416, %s417, %s418
    %p422 = pneg %p416
    %p423 = scmp.eq.s32.totalorder %s24, 1
    %p424 = por %p422, %p423
    %p425 = scmp.ne.s32.totalorder %s417, %s420
    %p426 = scmp.eq.s32.totalorder %s24, 0
    %p427 = por %p425, %p426
    %p428 = scmp.ne.s32.totalorder %s417, %s420
    %p429 = scmp.eq.s32.totalorder %s29, 1
    %p430 = por %p428, %p429
    %p431 = scmp.ne.s32.totalorder %s420, %s421
    %p432 = scmp.eq.s32.totalorder %s29, 0
    %p433 = por %p431, %p432
    %p434 = scmp.ne.s32.totalorder %s420, %s421
    %p435 = scmp.eq.s32.totalorder %s30, 1
    %p436 = por %p434, %p435
    %p438 = scmp.ne.s32.totalorder %s421, %s437
    %p439 = scmp.eq.s32.totalorder %s30, 0
    %p440 = por %p438, %p439
    %p441 = scmp.le.s32.totalorder 1, %s24
    %p442 = scmp.lt.s32.totalorder %s24, 3
    %p443 = pnand %p441, %p442
    %p444 = pneg %p443
    // Predicated region
    $region9: #{vision_encoder_forward.1} parent=5 // pred_check
      _
    $region10: #{vision_encoder_forward.1} parent=5 // pred_check_branch
      %446 = sbr.rel (%p443) target = $region12
    $region11: #{vision_encoder_forward.1} parent=5 // pred_region
      %s447 = ssub.s32 %s24, 1
      // Predicated region
      $region13: #{vision_encoder_forward.1} parent=11 // pred_check
        %p448 = pneg %p71
      $region14: #{vision_encoder_forward.1} parent=11 // pred_check_branch
        %450 = sbr.rel (%p448) target = $region16
      $region15: #{vision_encoder_forward.1} parent=11 // pred_region
        _
      $region16: #{vision_encoder_forward.1} parent=11 // pred_fallthru
        _
      // Predicated region
      $region17: #{vision_encoder_forward.1} parent=11 // pred_check
        %p451 = pneg %p92
      $region18: #{vision_encoder_forward.1} parent=11 // pred_check_branch
        %453 = sbr.rel (%p451) target = $region20
      $region19: #{vision_encoder_forward.1} parent=11 // pred_region
        _
      $region20: #{vision_encoder_forward.1} parent=11 // pred_fallthru
        _
      // Predicated region
      $region21: #{vision_encoder_forward.1} parent=11 // pred_check
        %p454 = pneg %p113
      $region22: #{vision_encoder_forward.1} parent=11 // pred_check_branch
        %456 = sbr.rel (%p454) target = $region24
      $region23: #{vision_encoder_forward.1} parent=11 // pred_region
        _
      $region24: #{vision_encoder_forward.1} parent=11 // pred_fallthru
        _
      // Predicated region
      $region25: #{vision_encoder_forward.1} parent=11 // pred_check
        %p457 = pneg %p134
      $region26: #{vision_encoder_forward.1} parent=11 // pred_check_branch
        %459 = sbr.rel (%p457) target = $region28
      $region27: #{vision_encoder_forward.1} parent=11 // pred_region
        _
      $region28: #{vision_encoder_forward.1} parent=11 // pred_fallthru
        _
      // Predicated region
      $region29: #{vision_encoder_forward.1} parent=11 // pred_check
        %p460 = pneg %p155
      $region30: #{vision_encoder_forward.1} parent=11 // pred_check_branch
        %462 = sbr.rel (%p460) target = $region32
      $region31: #{vision_encoder_forward.1} parent=11 // pred_region
        _
      $region32: #{vision_encoder_forward.1} parent=11 // pred_fallthru
        _
      // Predicated region
      $region33: #{vision_encoder_forward.1} parent=11 // pred_check
        %p463 = pneg %p176
      $region34: #{vision_encoder_forward.1} parent=11 // pred_check_branch
        %465 = sbr.rel (%p463) target = $region36
      $region35: #{vision_encoder_forward.1} parent=11 // pred_region
        _
      $region36: #{vision_encoder_forward.1} parent=11 // pred_fallthru
        _
      // Predicated region
      $region37: #{vision_encoder_forward.1} parent=11 // pred_check
        %p466 = pneg %p197
      $region38: #{vision_encoder_forward.1} parent=11 // pred_check_branch
        %468 = sbr.rel (%p466) target = $region40
      $region39: #{vision_encoder_forward.1} parent=11 // pred_region
        _
      $region40: #{vision_encoder_forward.1} parent=11 // pred_fallthru
        _
      // Predicated region
      $region41: #{vision_encoder_forward.1} parent=11 // pred_check
        %p469 = pneg %p218
      $region42: #{vision_encoder_forward.1} parent=11 // pred_check_branch
        %471 = sbr.rel (%p469) target = $region44
      $region43: #{vision_encoder_forward.1} parent=11 // pred_region
        _
      $region44: #{vision_encoder_forward.1} parent=11 // pred_fallthru
        _
      // Predicated region
      $region45: #{vision_encoder_forward.1} parent=11 // pred_check
        %p472 = pneg %p239
      $region46: #{vision_encoder_forward.1} parent=11 // pred_check_branch
        %474 = sbr.rel (%p472) target = $region48
      $region47: #{vision_encoder_forward.1} parent=11 // pred_region
        _
      $region48: #{vision_encoder_forward.1} parent=11 // pred_fallthru
        _
      // Predicated region
      $region49: #{vision_encoder_forward.1} parent=11 // pred_check
        %p475 = pneg %p260
      $region50: #{vision_encoder_forward.1} parent=11 // pred_check_branch
        %477 = sbr.rel (%p475) target = $region52
      $region51: #{vision_encoder_forward.1} parent=11 // pred_region
        _
      $region52: #{vision_encoder_forward.1} parent=11 // pred_fallthru
        _
      // Predicated region
      $region53: #{vision_encoder_forward.1} parent=11 // pred_check
        %p478 = pneg %p281
      $region54: #{vision_encoder_forward.1} parent=11 // pred_check_branch
        %480 = sbr.rel (%p478) target = $region56
      $region55: #{vision_encoder_forward.1} parent=11 // pred_region
        _
      $region56: #{vision_encoder_forward.1} parent=11 // pred_fallthru
        _
      // Predicated region
      $region57: #{vision_encoder_forward.1} parent=11 // pred_check
        %p481 = pneg %p302
      $region58: #{vision_encoder_forward.1} parent=11 // pred_check_branch
        %483 = sbr.rel (%p481) target = $region60
      $region59: #{vision_encoder_forward.1} parent=11 // pred_region
        _
      $region60: #{vision_encoder_forward.1} parent=11 // pred_fallthru
        _
      // Predicated region
      $region61: #{vision_encoder_forward.1} parent=11 // pred_check
        %p484 = pneg %p323
      $region62: #{vision_encoder_forward.1} parent=11 // pred_check_branch
        %486 = sbr.rel (%p484) target = $region64
      $region63: #{vision_encoder_forward.1} parent=11 // pred_region
        _
      $region64: #{vision_encoder_forward.1} parent=11 // pred_fallthru
        _
      // Predicated region
      $region65: #{vision_encoder_forward.1} parent=11 // pred_check
        %p487 = pneg %p344
      $region66: #{vision_encoder_forward.1} parent=11 // pred_check_branch
        %489 = sbr.rel (%p487) target = $region68
      $region67: #{vision_encoder_forward.1} parent=11 // pred_region
        _
      $region68: #{vision_encoder_forward.1} parent=11 // pred_fallthru
        _
      // Predicated region
      $region69: #{vision_encoder_forward.1} parent=11 // pred_check
        %p490 = pneg %p365
      $region70: #{vision_encoder_forward.1} parent=11 // pred_check_branch
        %492 = sbr.rel (%p490) target = $region72
      $region71: #{vision_encoder_forward.1} parent=11 // pred_region
        _
      $region72: #{vision_encoder_forward.1} parent=11 // pred_fallthru
        _
      // Predicated region
      $region73: #{vision_encoder_forward.1} parent=11 // pred_check
        %p493 = pneg %p386
      $region74: #{vision_encoder_forward.1} parent=11 // pred_check_branch
        %495 = sbr.rel (%p493) target = $region76
      $region75: #{vision_encoder_forward.1} parent=11 // pred_region
        _
      $region76: #{vision_encoder_forward.1} parent=11 // pred_fallthru
        _
      // Predicated region
      $region77: #{vision_encoder_forward.1} parent=11 // pred_check
        %p496 = pneg %p407
      $region78: #{vision_encoder_forward.1} parent=11 // pred_check_branch
        %498 = sbr.rel (%p496) target = $region80
      $region79: #{vision_encoder_forward.1} parent=11 // pred_region
        _
      $region80: #{vision_encoder_forward.1} parent=11 // pred_fallthru
        _
    $region12: #{vision_encoder_forward.1} parent=5 // pred_fallthru
      _
    %p499 = scmp.lt.s32.totalorder %s24, 2
    // Predicated region
    $region81: #{vision_encoder_forward.1} parent=5 // pred_check
      %p500 = pneg %p499
    $region82: #{vision_encoder_forward.1} parent=5 // pred_check_branch
      %502 = sbr.rel (%p500) target = $region84
    $region83: #{vision_encoder_forward.1} parent=5 // pred_region
      // Predicated region
      $region85: #{vision_encoder_forward.1} parent=83 // pred_check
        %p503 = pneg %p44
      $region86: #{vision_encoder_forward.1} parent=83 // pred_check_branch
        %505 = sbr.rel (%p503) target = $region88
      $region87: #{vision_encoder_forward.1} parent=83 // pred_region
        %p506 = scmp.lt.s32.totalorder %s24, 1
        %s507 = scalar_select %p506, %s24, 1
        %s508 = smul.addr %s507, 2
        %s509 = smul.addr %s508, 4
        %s510 = scalar_lea.vmem %s0, %s509
      $region88: #{vision_encoder_forward.1} parent=83 // pred_fallthru
        _
    $region84: #{vision_encoder_forward.1} parent=5 // pred_fallthru
      _
    %p511 = scmp.le.s32.totalorder 1, %s24
    %p512 = scmp.lt.s32.totalorder %s24, 3
    %p513 = pnand %p511, %p512
    %p514 = pneg %p513
    // Predicated region
    $region89: #{vision_encoder_forward.1} parent=5 // pred_check
      _
    $region90: #{vision_encoder_forward.1} parent=5 // pred_check_branch
      %516 = sbr.rel (%p513) target = $region92
    $region91: #{vision_encoder_forward.1} parent=5 // pred_region
      %s517 = ssub.s32 %s24, 1
      %p518 = scmp.lt.s32.totalorder %s29, 1
      %s519 = scalar_select %p518, %s29, 1
      %s520 = smul.addr %s519, 2
      %s521 = smul.addr %s520, 4
      %s522 = scalar_lea.vmem %s0, %s521
      %p523 = pneg %p50
      %p524 = pneg %p47
      %p525 = pneg %p71
      %p526 = pneg %p68
      %p527 = pneg %p92
      %p528 = pneg %p89
      %p529 = pneg %p113
      %p530 = pneg %p110
      %p531 = pneg %p134
      %p532 = pneg %p131
      %p533 = pneg %p155
      %p534 = pneg %p152
      %p535 = pneg %p176
      %p536 = pneg %p173
      %p537 = pneg %p197
      %p538 = pneg %p194
      %p539 = pneg %p218
      %p540 = pneg %p215
      %p541 = pneg %p239
      %p542 = pneg %p236
      %p543 = pneg %p260
      %p544 = pneg %p257
      %p545 = pneg %p281
      %p546 = pneg %p278
      %p547 = pneg %p302
      %p548 = pneg %p299
      %p549 = pneg %p323
      %p550 = pneg %p320
      %p551 = pneg %p344
      %p552 = pneg %p341
      %p553 = pneg %p365
      %p554 = pneg %p362
      %p555 = pneg %p386
      %p556 = pneg %p383
      %p557 = pneg %p407
      %p558 = pneg %p404
      %p559 = pneg %p433
      %p560 = pneg %p430
      %p561 = scmp.lt.s32.totalorder %s29, 1
      %s562 = scalar_select %p561, %s29, 1
      %s563 = smul.addr %s562, 8
      %s564 = scalar_lea.vmem %s18, %s563
      %p565 = scmp.lt.s32.totalorder %s29, 1
      %s566 = scalar_select %p565, %s29, 1
      %s567 = smul.addr %s566, 2
      %s568 = smul.addr %s567, 4
      %s569 = scalar_lea.vmem %s0, %s568
      %p570 = scmp.lt.s32.totalorder %s29, 1
      %s571 = scalar_select %p570, %s29, 1
      %s572 = smul.addr %s571, 8
      %s573 = scalar_lea.vmem %s18, %s572
      %v575 = vld [vmem:[%s569] sm:$0xff]
      %v576 = vld [vmem:[%s1] sm:$0xf]
      %v577 = vld [vmem:[%s1 + $0x4] sm:$0xf]
      %v578 = vld [vmem:[%s1 + $0x8] sm:$0xf]
      %v579 = vld [vmem:[%s1 + $0xc] sm:$0xf]
      %v580 = vld [vmem:[%s1 + $0x10] sm:$0xf]
      %v581 = vld [vmem:[%s1 + $0x14] sm:$0xf]
      %v582 = vld [vmem:[%s1 + $0x18] sm:$0xf]
      %v583 = vld [vmem:[%s1 + $0x1c] sm:$0xf]
      %v584 = vld [vmem:[%s1 + $0x20] sm:$0xf]
      %v585 = vld [vmem:[%s1 + $0x24] sm:$0xf]
      %v586 = vld [vmem:[%s1 + $0x28] sm:$0xf]
      %v587 = vld [vmem:[%s1 + $0x2c] sm:$0xf]
      %v588 = vld [vmem:[%s1 + $0x30] sm:$0xf]
      %v589 = vld [vmem:[%s1 + $0x34] sm:$0xf]
      %v590 = vld [vmem:[%s1 + $0x38] sm:$0xf]
      %v591 = vld [vmem:[%s1 + $0x3c] sm:$0xf]
      %v592 = vld [vmem:[%s1 + $0x40] sm:$0xf]
      %v593 = vld [vmem:[%s1 + $0x44] sm:$0xf]
      %v594 = vld [vmem:[%s1 + $0x48] sm:$0xf]
      %v595 = vld [vmem:[%s1 + $0x4c] sm:$0xf]
      %v596 = vld [vmem:[%s1 + $0x50] sm:$0xf]
      %v597 = vld [vmem:[%s1 + $0x54] sm:$0xf]
      %v598 = vld [vmem:[%s1 + $0x58] sm:$0xf]
      %v599 = vld [vmem:[%s1 + $0x5c] sm:$0xf]
      %v601 = vcombine.high %v575, %v575
      %v603 = vpack.c.bf16 %v575, %v575
      %v604 = vpack.c.bf16 %v601, %v601
      %v605 = vld [vmem:[%s2] sm:$0x1]
      %v606 = vld [vmem:[%s3] sm:$0x1]
      %v607 = vadd.f32 %v605, %v606
      %vm608 = vcmask 253952
      %609 = vst.msk [vmem:[#allocation2] sm:$0x1] %vm608, %v607
      %v610 = vld [vmem:[%s3 + $0x1] sm:$0xf]
      %v635 = vunpack.c.l.b16 %v576
      %v636 = vunpack.c.l.b16 %v577
      %v637 = vunpack.c.l.b16 %v578
      %v638 = vunpack.c.l.b16 %v579
      %v639 = vunpack.c.l.b16 %v580
      %v640 = vunpack.c.l.b16 %v581
      %v641 = vunpack.c.l.b16 %v582
      %v642 = vunpack.c.l.b16 %v583
      %v643 = vunpack.c.l.b16 %v584
      %v644 = vunpack.c.l.b16 %v585
      %v645 = vunpack.c.l.b16 %v586
      %v646 = vunpack.c.l.b16 %v587
      %v647 = vunpack.c.l.b16 %v588
      %v648 = vunpack.c.l.b16 %v589
      %v649 = vunpack.c.l.b16 %v590
      %v650 = vunpack.c.l.b16 %v591
      %v651 = vunpack.c.l.b16 %v592
      %v652 = vunpack.c.l.b16 %v593
      %v653 = vunpack.c.l.b16 %v594
      %v654 = vunpack.c.l.b16 %v595
      %v655 = vunpack.c.l.b16 %v596
      %v656 = vunpack.c.l.b16 %v597
      %v657 = vunpack.c.l.b16 %v598
      %v658 = vunpack.c.l.b16 %v599
      %v659 = vpack.c.b16 %v636, %v635
      %v660 = vpack.c.b16 %v638, %v637
      %v661 = vpack.c.b16 %v640, %v639
      %v662 = vpack.c.b16 %v642, %v641
      %v663 = vpack.c.b16 %v644, %v643
      %v664 = vpack.c.b16 %v646, %v645
      %v665 = vpack.c.b16 %v648, %v647
      %v666 = vpack.c.b16 %v650, %v649
      %v667 = vpack.c.b16 %v652, %v651
      %v668 = vpack.c.b16 %v654, %v653
      %v669 = vpack.c.b16 %v656, %v655
      %v670 = vpack.c.b16 %v658, %v657
      %vm683 = vcmask 523264
      %v685 = vsel %vm683, %v604, 0
      %687 = vmatprep.subr.bf16.mxu0 0
      %688 = vmatpush1.bf16.msra.mxu0 %v666
      %689 = vmatprep.subr.bf16.mxu0 0
      %690 = vmatpush1.bf16.msra.mxu0 %v665
      %691 = vmatprep.subr.bf16.mxu0 0
      %692 = vmatpush1.bf16.msra.mxu0 %v664
      %693 = vmatprep.subr.bf16.mxu0 0
      %694 = vmatpush1.bf16.msra.mxu0 %v663
      %695 = vmatprep.subr.bf16.mxu0 0
      %696 = vmatpush1.bf16.msra.mxu0 %v662
      %697 = vmatprep.subr.bf16.mxu0 0
      %698 = vmatpush1.bf16.msra.mxu0 %v661
      %699 = vmatprep.subr.bf16.mxu0 0
      %700 = vmatpush1.bf16.msra.mxu0 %v660
      %701 = vmatprep.subr.bf16.mxu0 0
      %702 = vmatpush1.bf16.msra.mxu0 %v659
      %703 = vmatprep.subr.bf16.mxu0 0
      %704 = vmatpush2.bf16.msra.mxu0 0
      %705 = vmatprep.subr.bf16.mxu0 0
      %706 = vmatpush2.bf16.msra.mxu0 0
      %707 = vmatprep.subr.bf16.mxu0 0
      %708 = vmatpush2.bf16.msra.mxu0 0
      %709 = vmatprep.subr.bf16.mxu0 0
      %710 = vmatpush2.bf16.msra.mxu0 0
      %711 = vmatprep.subr.bf16.mxu0 0
      %712 = vmatpush2.bf16.msra.mxu0 %v670
      %713 = vmatprep.subr.bf16.mxu0 0
      %714 = vmatpush2.bf16.msra.mxu0 %v669
      %715 = vmatprep.subr.bf16.mxu0 0
      %716 = vmatpush2.bf16.msra.mxu0 %v668
      %717 = vmatprep.subr.bf16.mxu0 0
      %718 = vmatpush2.bf16.msra.mxu0 %v667
      %719 = vmatprep.mubr.bf16.mxu0 %v685
      %720 = vmatmul.mubr.bf16.gmra.mxu0 %v603
      %v721 = vpop.f32.mrf.mxu0
      %v722 = vadd.f32 %v610, %v721
      %v723 = vpop.f32.mrf.mxu0
      %v724 = vpop.f32.mrf.mxu0
      %v725 = vpop.f32.mrf.mxu0
      %726 = vdwg.mxu0
      %vm727 = vcmask 257024
      %728 = vst.msk [vmem:[#allocation2 + $0x1] sm:$0xf] %vm727, %v722
      %vm729 = vcmask 256000
      %730 = vst.msk [vmem:[#allocation2 + $0x5] sm:$0x7] %vm729, 0.0
      %v731 = vld [vmem:[#allocation2] sm:$0xff]
      %v732 = vld [vmem:[%s4] sm:$0x1]
      %v733 = vld [vmem:[%s5] sm:$0x1]
      %vm734 = vcmask 261120
      %v735 = vsel %vm734, %v731, 0.0
      %736 = vadd.xlane.f32.xlu0 %v735
      %v737 = vpop.xlane.xlu0 %736
      %v738 = vrcp.pop 32.0
      %v739 = vmul.f32 %v737, %v738
      %v740 = vsub.f32 %v731, %v739
      %v741 = vmul.f32 %v740, %v740
      %v742 = vsel %vm734, %v741, 0.0
      %743 = vadd.xlane.f32.xlu0 %v742
      %v744 = vpop.xlane.xlu0 %743
      %v745 = vmul.f32 %v744, %v738
      %v746 = vadd.f32 %v745, 1e-05
      %v747 = vrsqrt.pop %v746
      %v748 = vmul.f32 %v740, %v747
      %v750 = vlaneseq
      %v751 = vshrl.u32 %v750, 7
      %v752 = vsub.s32 0, %v751
      %v753 = vrot.slane %v732, %v752
      %v755 = vmul.f32 %v748, %v753
      %v757 = vlaneseq
      %v758 = vshrl.u32 %v757, 7
      %v759 = vsub.s32 0, %v758
      %v760 = vrot.slane %v733, %v759
      %v762 = vadd.f32 %v755, %v760
      %v763 = vlaneseq
      %v764 = vand.u32 %v763, 127
      %vm765 = vcmp.lt.s32.totalorder %v764, 5
      %v766 = vsel %vm765, 0.0, -1e+30
      loop: start=0, step=1, limit=2
      $region93: #{vision_encoder_forward.1} parent=91 // loop_pre_header
        _
      $region94: #{vision_encoder_forward.1} parent=91 // loop_header
        %s768 = sphi 0, %s772
        %p769 = scmp.ge.s32.totalorder %s768, 2
        %v773 = vphi %v762, %v2290
      $region95: #{vision_encoder_forward.1} parent=91 // loop_header_branch
        %771 = sbr.rel (%p769) target = $region99
      $region96: #{vision_encoder_forward.1} parent=91 // loop_body
        %s774 = scalar_lea.vmem %s6, %s768
        %v775 = vld [vmem:[%s774] sm:$0x1]
        %s776 = scalar_lea.vmem %s7, %s768
        %v777 = vld [vmem:[%s776] sm:$0x1]
        %v778 = vsel %vm734, %v773, 0.0
        %779 = vadd.xlane.f32.xlu0 %v778
        %v780 = vpop.xlane.xlu0 %779
        %v781 = vmul.f32 %v780, %v738
        %v782 = vsub.f32 %v773, %v781
        %v783 = vmul.f32 %v782, %v782
        %v784 = vsel %vm734, %v783, 0.0
        %785 = vadd.xlane.f32.xlu0 %v784
        %v786 = vpop.xlane.xlu0 %785
        %v787 = vmul.f32 %v786, %v738
        %v788 = vadd.f32 %v787, 1e-05
        %v789 = vrsqrt.pop %v788
        %v790 = vmul.f32 %v782, %v789
        %v792 = vlaneseq
        %v793 = vshrl.u32 %v792, 7
        %v794 = vsub.s32 0, %v793
        %v795 = vrot.slane %v775, %v794
        %v797 = vmul.f32 %v790, %v795
        %v799 = vlaneseq
        %v800 = vshrl.u32 %v799, 7
        %v801 = vsub.s32 0, %v800
        %v802 = vrot.slane %v777, %v801
        %v804 = vadd.f32 %v797, %v802
        %v805 = vpack.c.bf16 %v804, %v804
        %s806 = smul.u32 %s768, 48
        %s807 = smul.addr %s806, 4
        %s808 = scalar_lea.vmem %s8, %s807
        %v809 = vld [vmem:[%s808] sm:$0xf]
        %v810 = vld [vmem:[%s808 + $0x4] sm:$0xf]
        %v811 = vld [vmem:[%s808 + $0x8] sm:$0xf]
        %v812 = vld [vmem:[%s808 + $0xc] sm:$0xf]
        %v813 = vld [vmem:[%s808 + $0x10] sm:$0xf]
        %v814 = vld [vmem:[%s808 + $0x14] sm:$0xf]
        %v815 = vld [vmem:[%s808 + $0x18] sm:$0xf]
        %v816 = vld [vmem:[%s808 + $0x1c] sm:$0xf]
        %v817 = vld [vmem:[%s808 + $0x20] sm:$0xf]
        %v818 = vld [vmem:[%s808 + $0x24] sm:$0xf]
        %v819 = vld [vmem:[%s808 + $0x28] sm:$0xf]
        %v820 = vld [vmem:[%s808 + $0x2c] sm:$0xf]
        %v821 = vld [vmem:[%s808 + $0x30] sm:$0xf]
        %v822 = vld [vmem:[%s808 + $0x34] sm:$0xf]
        %v823 = vld [vmem:[%s808 + $0x38] sm:$0xf]
        %v824 = vld [vmem:[%s808 + $0x3c] sm:$0xf]
        %v825 = vld [vmem:[%s808 + $0x40] sm:$0xf]
        %v826 = vld [vmem:[%s808 + $0x44] sm:$0xf]
        %v827 = vld [vmem:[%s808 + $0x48] sm:$0xf]
        %v828 = vld [vmem:[%s808 + $0x4c] sm:$0xf]
        %v829 = vld [vmem:[%s808 + $0x50] sm:$0xf]
        %v830 = vld [vmem:[%s808 + $0x54] sm:$0xf]
        %v831 = vld [vmem:[%s808 + $0x58] sm:$0xf]
        %v832 = vld [vmem:[%s808 + $0x5c] sm:$0xf]
        %v833 = vld [vmem:[%s808 + $0x60] sm:$0xf]
        %v834 = vld [vmem:[%s808 + $0x64] sm:$0xf]
        %v835 = vld [vmem:[%s808 + $0x68] sm:$0xf]
        %v836 = vld [vmem:[%s808 + $0x6c] sm:$0xf]
        %v837 = vld [vmem:[%s808 + $0x70] sm:$0xf]
        %v838 = vld [vmem:[%s808 + $0x74] sm:$0xf]
        %v839 = vld [vmem:[%s808 + $0x78] sm:$0xf]
        %v840 = vld [vmem:[%s808 + $0x7c] sm:$0xf]
        %v841 = vld [vmem:[%s808 + $0x80] sm:$0xf]
        %v842 = vld [vmem:[%s808 + $0x84] sm:$0xf]
        %v843 = vld [vmem:[%s808 + $0x88] sm:$0xf]
        %v844 = vld [vmem:[%s808 + $0x8c] sm:$0xf]
        %v845 = vld [vmem:[%s808 + $0x90] sm:$0xf]
        %v846 = vld [vmem:[%s808 + $0x94] sm:$0xf]
        %v847 = vld [vmem:[%s808 + $0x98] sm:$0xf]
        %v848 = vld [vmem:[%s808 + $0x9c] sm:$0xf]
        %v849 = vld [vmem:[%s808 + $0xa0] sm:$0xf]
        %v850 = vld [vmem:[%s808 + $0xa4] sm:$0xf]
        %v851 = vld [vmem:[%s808 + $0xa8] sm:$0xf]
        %v852 = vld [vmem:[%s808 + $0xac] sm:$0xf]
        %v853 = vld [vmem:[%s808 + $0xb0] sm:$0xf]
        %v854 = vld [vmem:[%s808 + $0xb4] sm:$0xf]
        %v855 = vld [vmem:[%s808 + $0xb8] sm:$0xf]
        %v856 = vld [vmem:[%s808 + $0xbc] sm:$0xf]
        %s857 = smul.u32 %s768, 12
        %s858 = scalar_lea.vmem %s9, %s857
        %v859 = vld [vmem:[%s858] sm:$0x1]
        %v860 = vld [vmem:[%s858 + $0x1] sm:$0x1]
        %v861 = vld [vmem:[%s858 + $0x2] sm:$0x1]
        %v862 = vld [vmem:[%s858 + $0x3] sm:$0x1]
        %v863 = vld [vmem:[%s858 + $0x4] sm:$0x1]
        %v864 = vld [vmem:[%s858 + $0x5] sm:$0x1]
        %v865 = vld [vmem:[%s858 + $0x6] sm:$0x1]
        %v866 = vld [vmem:[%s858 + $0x7] sm:$0x1]
        %v867 = vld [vmem:[%s858 + $0x8] sm:$0x1]
        %v868 = vld [vmem:[%s858 + $0x9] sm:$0x1]
        %v869 = vld [vmem:[%s858 + $0xa] sm:$0x1]
        %v870 = vld [vmem:[%s858 + $0xb] sm:$0x1]
        %v875 = vlaneseq
        %v876 = vshrl.u32 %v875, 7
        %v877 = vsub.s32 0, %v876
        %v878 = vrot.slane %v859, %v877
        %v879 = vlaneseq
        %v880 = vshrl.u32 %v879, 7
        %v881 = vsub.s32 0, %v880
        %v882 = vrot.slane %v860, %v881
        %v883 = vlaneseq
        %v884 = vshrl.u32 %v883, 7
        %v885 = vsub.s32 0, %v884
        %v886 = vrot.slane %v861, %v885
        %v887 = vlaneseq
        %v888 = vshrl.u32 %v887, 7
        %v889 = vsub.s32 0, %v888
        %v890 = vrot.slane %v862, %v889
        %v899 = vunpack.c.l.b16 %v809
        %v900 = vunpack.c.l.b16 %v810
        %v901 = vunpack.c.l.b16 %v811
        %v902 = vunpack.c.l.b16 %v812
        %v903 = vpack.c.b16 %v900, %v899
        %v904 = vpack.c.b16 %v902, %v901
        %v908 = vsel %vm734, %v805, 0
        %910 = vmatprep.subr.bf16.mxu0 0
        %911 = vmatpush1.bf16.msra.mxu0 0
        %912 = vmatprep.subr.bf16.mxu0 0
        %913 = vmatpush1.bf16.msra.mxu0 0
        %914 = vmatprep.subr.bf16.mxu0 0
        %915 = vmatpush1.bf16.msra.mxu0 0
        %916 = vmatprep.subr.bf16.mxu0 0
        %917 = vmatpush1.bf16.msra.mxu0 0
        %918 = vmatprep.subr.bf16.mxu0 0
        %919 = vmatpush1.bf16.msra.mxu0 0
        %920 = vmatprep.subr.bf16.mxu0 0
        %921 = vmatpush1.bf16.msra.mxu0 0
        %922 = vmatprep.subr.bf16.mxu0 0
        %923 = vmatpush1.bf16.msra.mxu0 %v904
        %924 = vmatprep.subr.bf16.mxu0 0
        %925 = vmatpush1.bf16.msra.mxu0 %v903
        %926 = vmatprep.subr.bf16.mxu0 0
        %927 = vmatpush2.bf16.msra.mxu0 0
        %928 = vmatprep.subr.bf16.mxu0 0
        %929 = vmatpush2.bf16.msra.mxu0 0
        %930 = vmatprep.subr.bf16.mxu0 0
        %931 = vmatpush2.bf16.msra.mxu0 0
        %932 = vmatprep.subr.bf16.mxu0 0
        %933 = vmatpush2.bf16.msra.mxu0 0
        %934 = vmatprep.subr.bf16.mxu0 0
        %935 = vmatpush2.bf16.msra.mxu0 0
        %936 = vmatprep.subr.bf16.mxu0 0
        %937 = vmatpush2.bf16.msra.mxu0 0
        %938 = vmatprep.subr.bf16.mxu0 0
        %939 = vmatpush2.bf16.msra.mxu0 0
        %940 = vmatprep.subr.bf16.mxu0 0
        %941 = vmatpush2.bf16.msra.mxu0 0
        %942 = vmatprep.mubr.bf16.mxu0 0
        %943 = vmatmul.mubr.bf16.gmra.mxu0 %v908
        %v944 = vpop.f32.mrf.mxu0
        %v945 = vadd.f32 %v878, %v944
        %v946 = vpop.f32.mrf.mxu0
        %v947 = vpop.f32.mrf.mxu0
        %v948 = vpop.f32.mrf.mxu0
        %949 = vdwg.mxu0
        %v954 = vunpack.c.l.b16 %v813
        %v955 = vunpack.c.l.b16 %v814
        %v956 = vunpack.c.l.b16 %v815
        %v957 = vunpack.c.l.b16 %v816
        %v958 = vpack.c.b16 %v955, %v954
        %v959 = vpack.c.b16 %v957, %v956
        %962 = vmatprep.subr.bf16.mxu0 0
        %963 = vmatpush1.bf16.msra.mxu0 0
        %964 = vmatprep.subr.bf16.mxu0 0
        %965 = vmatpush1.bf16.msra.mxu0 0
        %966 = vmatprep.subr.bf16.mxu0 0
        %967 = vmatpush1.bf16.msra.mxu0 0
        %968 = vmatprep.subr.bf16.mxu0 0
        %969 = vmatpush1.bf16.msra.mxu0 0
        %970 = vmatprep.subr.bf16.mxu0 0
        %971 = vmatpush1.bf16.msra.mxu0 0
        %972 = vmatprep.subr.bf16.mxu0 0
        %973 = vmatpush1.bf16.msra.mxu0 0
        %974 = vmatprep.subr.bf16.mxu0 0
        %975 = vmatpush1.bf16.msra.mxu0 %v959
        %976 = vmatprep.subr.bf16.mxu0 0
        %977 = vmatpush1.bf16.msra.mxu0 %v958
        %978 = vmatprep.subr.bf16.mxu0 0
        %979 = vmatpush2.bf16.msra.mxu0 0
        %980 = vmatprep.subr.bf16.mxu0 0
        %981 = vmatpush2.bf16.msra.mxu0 0
        %982 = vmatprep.subr.bf16.mxu0 0
        %983 = vmatpush2.bf16.msra.mxu0 0
        %984 = vmatprep.subr.bf16.mxu0 0
        %985 = vmatpush2.bf16.msra.mxu0 0
        %986 = vmatprep.subr.bf16.mxu0 0
        %987 = vmatpush2.bf16.msra.mxu0 0
        %988 = vmatprep.subr.bf16.mxu0 0
        %989 = vmatpush2.bf16.msra.mxu0 0
        %990 = vmatprep.subr.bf16.mxu0 0
        %991 = vmatpush2.bf16.msra.mxu0 0
        %992 = vmatprep.subr.bf16.mxu0 0
        %993 = vmatpush2.bf16.msra.mxu0 0
        %994 = vmatprep.mubr.bf16.mxu0 0
        %995 = vmatmul.mubr.bf16.gmra.mxu0 %v908
        %v996 = vpop.f32.mrf.mxu0
        %v997 = vadd.f32 %v882, %v996
        %v998 = vpop.f32.mrf.mxu0
        %v999 = vpop.f32.mrf.mxu0
        %v1000 = vpop.f32.mrf.mxu0
        %1001 = vdwg.mxu0
        %v1006 = vunpack.c.l.b16 %v817
        %v1007 = vunpack.c.l.b16 %v818
        %v1008 = vunpack.c.l.b16 %v819
        %v1009 = vunpack.c.l.b16 %v820
        %v1010 = vpack.c.b16 %v1007, %v1006
        %v1011 = vpack.c.b16 %v1009, %v1008
        %1014 = vmatprep.subr.bf16.mxu0 0
        %1015 = vmatpush1.bf16.msra.mxu0 0
        %1016 = vmatprep.subr.bf16.mxu0 0
        %1017 = vmatpush1.bf16.msra.mxu0 0
        %1018 = vmatprep.subr.bf16.mxu0 0
        %1019 = vmatpush1.bf16.msra.mxu0 0
        %1020 = vmatprep.subr.bf16.mxu0 0
        %1021 = vmatpush1.bf16.msra.mxu0 0
        %1022 = vmatprep.subr.bf16.mxu0 0
        %1023 = vmatpush1.bf16.msra.mxu0 0
        %1024 = vmatprep.subr.bf16.mxu0 0
        %1025 = vmatpush1.bf16.msra.mxu0 0
        %1026 = vmatprep.subr.bf16.mxu0 0
        %1027 = vmatpush1.bf16.msra.mxu0 %v1011
        %1028 = vmatprep.subr.bf16.mxu0 0
        %1029 = vmatpush1.bf16.msra.mxu0 %v1010
        %1030 = vmatprep.subr.bf16.mxu0 0
        %1031 = vmatpush2.bf16.msra.mxu0 0
        %1032 = vmatprep.subr.bf16.mxu0 0
        %1033 = vmatpush2.bf16.msra.mxu0 0
        %1034 = vmatprep.subr.bf16.mxu0 0
        %1035 = vmatpush2.bf16.msra.mxu0 0
        %1036 = vmatprep.subr.bf16.mxu0 0
        %1037 = vmatpush2.bf16.msra.mxu0 0
        %1038 = vmatprep.subr.bf16.mxu0 0
        %1039 = vmatpush2.bf16.msra.mxu0 0
        %1040 = vmatprep.subr.bf16.mxu0 0
        %1041 = vmatpush2.bf16.msra.mxu0 0
        %1042 = vmatprep.subr.bf16.mxu0 0
        %1043 = vmatpush2.bf16.msra.mxu0 0
        %1044 = vmatprep.subr.bf16.mxu0 0
        %1045 = vmatpush2.bf16.msra.mxu0 0
        %1046 = vmatprep.mubr.bf16.mxu0 0
        %1047 = vmatmul.mubr.bf16.gmra.mxu0 %v908
        %v1048 = vpop.f32.mrf.mxu0
        %v1049 = vadd.f32 %v886, %v1048
        %v1050 = vpop.f32.mrf.mxu0
        %v1051 = vpop.f32.mrf.mxu0
        %v1052 = vpop.f32.mrf.mxu0
        %1053 = vdwg.mxu0
        %v1058 = vunpack.c.l.b16 %v821
        %v1059 = vunpack.c.l.b16 %v822
        %v1060 = vunpack.c.l.b16 %v823
        %v1061 = vunpack.c.l.b16 %v824
        %v1062 = vpack.c.b16 %v1059, %v1058
        %v1063 = vpack.c.b16 %v1061, %v1060
        %1066 = vmatprep.subr.bf16.mxu0 0
        %1067 = vmatpush1.bf16.msra.mxu0 0
        %1068 = vmatprep.subr.bf16.mxu0 0
        %1069 = vmatpush1.bf16.msra.mxu0 0
        %1070 = vmatprep.subr.bf16.mxu0 0
        %1071 = vmatpush1.bf16.msra.mxu0 0
        %1072 = vmatprep.subr.bf16.mxu0 0
        %1073 = vmatpush1.bf16.msra.mxu0 0
        %1074 = vmatprep.subr.bf16.mxu0 0
        %1075 = vmatpush1.bf16.msra.mxu0 0
        %1076 = vmatprep.subr.bf16.mxu0 0
        %1077 = vmatpush1.bf16.msra.mxu0 0
        %1078 = vmatprep.subr.bf16.mxu0 0
        %1079 = vmatpush1.bf16.msra.mxu0 %v1063
        %1080 = vmatprep.subr.bf16.mxu0 0
        %1081 = vmatpush1.bf16.msra.mxu0 %v1062
        %1082 = vmatprep.subr.bf16.mxu0 0
        %1083 = vmatpush2.bf16.msra.mxu0 0
        %1084 = vmatprep.subr.bf16.mxu0 0
        %1085 = vmatpush2.bf16.msra.mxu0 0
        %1086 = vmatprep.subr.bf16.mxu0 0
        %1087 = vmatpush2.bf16.msra.mxu0 0
        %1088 = vmatprep.subr.bf16.mxu0 0
        %1089 = vmatpush2.bf16.msra.mxu0 0
        %1090 = vmatprep.subr.bf16.mxu0 0
        %1091 = vmatpush2.bf16.msra.mxu0 0
        %1092 = vmatprep.subr.bf16.mxu0 0
        %1093 = vmatpush2.bf16.msra.mxu0 0
        %1094 = vmatprep.subr.bf16.mxu0 0
        %1095 = vmatpush2.bf16.msra.mxu0 0
        %1096 = vmatprep.subr.bf16.mxu0 0
        %1097 = vmatpush2.bf16.msra.mxu0 0
        %1098 = vmatprep.mubr.bf16.mxu0 0
        %1099 = vmatmul.mubr.bf16.gmra.mxu0 %v908
        %v1100 = vpop.f32.mrf.mxu0
        %v1101 = vadd.f32 %v890, %v1100
        %v1102 = vpop.f32.mrf.mxu0
        %v1103 = vpop.f32.mrf.mxu0
        %v1104 = vpop.f32.mrf.mxu0
        %1105 = vdwg.mxu0
        %v1110 = vlaneseq
        %v1111 = vshrl.u32 %v1110, 7
        %v1112 = vsub.s32 0, %v1111
        %v1113 = vrot.slane %v863, %v1112
        %v1114 = vlaneseq
        %v1115 = vshrl.u32 %v1114, 7
        %v1116 = vsub.s32 0, %v1115
        %v1117 = vrot.slane %v864, %v1116
        %v1118 = vlaneseq
        %v1119 = vshrl.u32 %v1118, 7
        %v1120 = vsub.s32 0, %v1119
        %v1121 = vrot.slane %v865, %v1120
        %v1122 = vlaneseq
        %v1123 = vshrl.u32 %v1122, 7
        %v1124 = vsub.s32 0, %v1123
        %v1125 = vrot.slane %v866, %v1124
        %v1134 = vunpack.c.l.b16 %v825
        %v1135 = vunpack.c.l.b16 %v826
        %v1136 = vunpack.c.l.b16 %v827
        %v1137 = vunpack.c.l.b16 %v828
        %v1138 = vpack.c.b16 %v1135, %v1134
        %v1139 = vpack.c.b16 %v1137, %v1136
        %1142 = vmatprep.subr.bf16.mxu0 0
        %1143 = vmatpush1.bf16.msra.mxu0 0
        %1144 = vmatprep.subr.bf16.mxu0 0
        %1145 = vmatpush1.bf16.msra.mxu0 0
        %1146 = vmatprep.subr.bf16.mxu0 0
        %1147 = vmatpush1.bf16.msra.mxu0 0
        %1148 = vmatprep.subr.bf16.mxu0 0
        %1149 = vmatpush1.bf16.msra.mxu0 0
        %1150 = vmatprep.subr.bf16.mxu0 0
        %1151 = vmatpush1.bf16.msra.mxu0 0
        %1152 = vmatprep.subr.bf16.mxu0 0
        %1153 = vmatpush1.bf16.msra.mxu0 0
        %1154 = vmatprep.subr.bf16.mxu0 0
        %1155 = vmatpush1.bf16.msra.mxu0 %v1139
        %1156 = vmatprep.subr.bf16.mxu0 0
        %1157 = vmatpush1.bf16.msra.mxu0 %v1138
        %1158 = vmatprep.subr.bf16.mxu0 0
        %1159 = vmatpush2.bf16.msra.mxu0 0
        %1160 = vmatprep.subr.bf16.mxu0 0
        %1161 = vmatpush2.bf16.msra.mxu0 0
        %1162 = vmatprep.subr.bf16.mxu0 0
        %1163 = vmatpush2.bf16.msra.mxu0 0
        %1164 = vmatprep.subr.bf16.mxu0 0
        %1165 = vmatpush2.bf16.msra.mxu0 0
        %1166 = vmatprep.subr.bf16.mxu0 0
        %1167 = vmatpush2.bf16.msra.mxu0 0
        %1168 = vmatprep.subr.bf16.mxu0 0
        %1169 = vmatpush2.bf16.msra.mxu0 0
        %1170 = vmatprep.subr.bf16.mxu0 0
        %1171 = vmatpush2.bf16.msra.mxu0 0
        %1172 = vmatprep.subr.bf16.mxu0 0
        %1173 = vmatpush2.bf16.msra.mxu0 0
        %1174 = vmatprep.mubr.bf16.mxu0 0
        %1175 = vmatmul.mubr.bf16.gmra.mxu0 %v908
        %v1176 = vpop.f32.mrf.mxu0
        %v1177 = vadd.f32 %v1113, %v1176
        %v1178 = vpop.f32.mrf.mxu0
        %v1179 = vpop.f32.mrf.mxu0
        %v1180 = vpop.f32.mrf.mxu0
        %1181 = vdwg.mxu0
        %v1186 = vunpack.c.l.b16 %v829
        %v1187 = vunpack.c.l.b16 %v830
        %v1188 = vunpack.c.l.b16 %v831
        %v1189 = vunpack.c.l.b16 %v832
        %v1190 = vpack.c.b16 %v1187, %v1186
        %v1191 = vpack.c.b16 %v1189, %v1188
        %1194 = vmatprep.subr.bf16.mxu0 0
        %1195 = vmatpush1.bf16.msra.mxu0 0
        %1196 = vmatprep.subr.bf16.mxu0 0
        %1197 = vmatpush1.bf16.msra.mxu0 0
        %1198 = vmatprep.subr.bf16.mxu0 0
        %1199 = vmatpush1.bf16.msra.mxu0 0
        %1200 = vmatprep.subr.bf16.mxu0 0
        %1201 = vmatpush1.bf16.msra.mxu0 0
        %1202 = vmatprep.subr.bf16.mxu0 0
        %1203 = vmatpush1.bf16.msra.mxu0 0
        %1204 = vmatprep.subr.bf16.mxu0 0
        %1205 = vmatpush1.bf16.msra.mxu0 0
        %1206 = vmatprep.subr.bf16.mxu0 0
        %1207 = vmatpush1.bf16.msra.mxu0 %v1191
        %1208 = vmatprep.subr.bf16.mxu0 0
        %1209 = vmatpush1.bf16.msra.mxu0 %v1190
        %1210 = vmatprep.subr.bf16.mxu0 0
        %1211 = vmatpush2.bf16.msra.mxu0 0
        %1212 = vmatprep.subr.bf16.mxu0 0
        %1213 = vmatpush2.bf16.msra.mxu0 0
        %1214 = vmatprep.subr.bf16.mxu0 0
        %1215 = vmatpush2.bf16.msra.mxu0 0
        %1216 = vmatprep.subr.bf16.mxu0 0
        %1217 = vmatpush2.bf16.msra.mxu0 0
        %1218 = vmatprep.subr.bf16.mxu0 0
        %1219 = vmatpush2.bf16.msra.mxu0 0
        %1220 = vmatprep.subr.bf16.mxu0 0
        %1221 = vmatpush2.bf16.msra.mxu0 0
        %1222 = vmatprep.subr.bf16.mxu0 0
        %1223 = vmatpush2.bf16.msra.mxu0 0
        %1224 = vmatprep.subr.bf16.mxu0 0
        %1225 = vmatpush2.bf16.msra.mxu0 0
        %1226 = vmatprep.mubr.bf16.mxu0 0
        %1227 = vmatmul.mubr.bf16.gmra.mxu0 %v908
        %v1228 = vpop.f32.mrf.mxu0
        %v1229 = vadd.f32 %v1117, %v1228
        %v1230 = vpop.f32.mrf.mxu0
        %v1231 = vpop.f32.mrf.mxu0
        %v1232 = vpop.f32.mrf.mxu0
        %1233 = vdwg.mxu0
        %v1238 = vunpack.c.l.b16 %v833
        %v1239 = vunpack.c.l.b16 %v834
        %v1240 = vunpack.c.l.b16 %v835
        %v1241 = vunpack.c.l.b16 %v836
        %v1242 = vpack.c.b16 %v1239, %v1238
        %v1243 = vpack.c.b16 %v1241, %v1240
        %1246 = vmatprep.subr.bf16.mxu0 0
        %1247 = vmatpush1.bf16.msra.mxu0 0
        %1248 = vmatprep.subr.bf16.mxu0 0
        %1249 = vmatpush1.bf16.msra.mxu0 0
        %1250 = vmatprep.subr.bf16.mxu0 0
        %1251 = vmatpush1.bf16.msra.mxu0 0
        %1252 = vmatprep.subr.bf16.mxu0 0
        %1253 = vmatpush1.bf16.msra.mxu0 0
        %1254 = vmatprep.subr.bf16.mxu0 0
        %1255 = vmatpush1.bf16.msra.mxu0 0
        %1256 = vmatprep.subr.bf16.mxu0 0
        %1257 = vmatpush1.bf16.msra.mxu0 0
        %1258 = vmatprep.subr.bf16.mxu0 0
        %1259 = vmatpush1.bf16.msra.mxu0 %v1243
        %1260 = vmatprep.subr.bf16.mxu0 0
        %1261 = vmatpush1.bf16.msra.mxu0 %v1242
        %1262 = vmatprep.subr.bf16.mxu0 0
        %1263 = vmatpush2.bf16.msra.mxu0 0
        %1264 = vmatprep.subr.bf16.mxu0 0
        %1265 = vmatpush2.bf16.msra.mxu0 0
        %1266 = vmatprep.subr.bf16.mxu0 0
        %1267 = vmatpush2.bf16.msra.mxu0 0
        %1268 = vmatprep.subr.bf16.mxu0 0
        %1269 = vmatpush2.bf16.msra.mxu0 0
        %1270 = vmatprep.subr.bf16.mxu0 0
        %1271 = vmatpush2.bf16.msra.mxu0 0
        %1272 = vmatprep.subr.bf16.mxu0 0
        %1273 = vmatpush2.bf16.msra.mxu0 0
        %1274 = vmatprep.subr.bf16.mxu0 0
        %1275 = vmatpush2.bf16.msra.mxu0 0
        %1276 = vmatprep.subr.bf16.mxu0 0
        %1277 = vmatpush2.bf16.msra.mxu0 0
        %1278 = vmatprep.mubr.bf16.mxu0 0
        %1279 = vmatmul.mubr.bf16.gmra.mxu0 %v908
        %v1280 = vpop.f32.mrf.mxu0
        %v1281 = vadd.f32 %v1121, %v1280
        %v1282 = vpop.f32.mrf.mxu0
        %v1283 = vpop.f32.mrf.mxu0
        %v1284 = vpop.f32.mrf.mxu0
        %1285 = vdwg.mxu0
        %v1290 = vunpack.c.l.b16 %v837
        %v1291 = vunpack.c.l.b16 %v838
        %v1292 = vunpack.c.l.b16 %v839
        %v1293 = vunpack.c.l.b16 %v840
        %v1294 = vpack.c.b16 %v1291, %v1290
        %v1295 = vpack.c.b16 %v1293, %v1292
        %1298 = vmatprep.subr.bf16.mxu0 0
        %1299 = vmatpush1.bf16.msra.mxu0 0
        %1300 = vmatprep.subr.bf16.mxu0 0
        %1301 = vmatpush1.bf16.msra.mxu0 0
        %1302 = vmatprep.subr.bf16.mxu0 0
        %1303 = vmatpush1.bf16.msra.mxu0 0
        %1304 = vmatprep.subr.bf16.mxu0 0
        %1305 = vmatpush1.bf16.msra.mxu0 0
        %1306 = vmatprep.subr.bf16.mxu0 0
        %1307 = vmatpush1.bf16.msra.mxu0 0
        %1308 = vmatprep.subr.bf16.mxu0 0
        %1309 = vmatpush1.bf16.msra.mxu0 0
        %1310 = vmatprep.subr.bf16.mxu0 0
        %1311 = vmatpush1.bf16.msra.mxu0 %v1295
        %1312 = vmatprep.subr.bf16.mxu0 0
        %1313 = vmatpush1.bf16.msra.mxu0 %v1294
        %1314 = vmatprep.subr.bf16.mxu0 0
        %1315 = vmatpush2.bf16.msra.mxu0 0
        %1316 = vmatprep.subr.bf16.mxu0 0
        %1317 = vmatpush2.bf16.msra.mxu0 0
        %1318 = vmatprep.subr.bf16.mxu0 0
        %1319 = vmatpush2.bf16.msra.mxu0 0
        %1320 = vmatprep.subr.bf16.mxu0 0
        %1321 = vmatpush2.bf16.msra.mxu0 0
        %1322 = vmatprep.subr.bf16.mxu0 0
        %1323 = vmatpush2.bf16.msra.mxu0 0
        %1324 = vmatprep.subr.bf16.mxu0 0
        %1325 = vmatpush2.bf16.msra.mxu0 0
        %1326 = vmatprep.subr.bf16.mxu0 0
        %1327 = vmatpush2.bf16.msra.mxu0 0
        %1328 = vmatprep.subr.bf16.mxu0 0
        %1329 = vmatpush2.bf16.msra.mxu0 0
        %1330 = vmatprep.mubr.bf16.mxu0 0
        %1331 = vmatmul.mubr.bf16.gmra.mxu0 %v908
        %v1332 = vpop.f32.mrf.mxu0
        %v1333 = vadd.f32 %v1125, %v1332
        %v1334 = vpop.f32.mrf.mxu0
        %v1335 = vpop.f32.mrf.mxu0
        %v1336 = vpop.f32.mrf.mxu0
        %1337 = vdwg.mxu0
        %v1342 = vlaneseq
        %v1343 = vshrl.u32 %v1342, 7
        %v1344 = vsub.s32 0, %v1343
        %v1345 = vrot.slane %v867, %v1344
        %v1346 = vlaneseq
        %v1347 = vshrl.u32 %v1346, 7
        %v1348 = vsub.s32 0, %v1347
        %v1349 = vrot.slane %v868, %v1348
        %v1350 = vlaneseq
        %v1351 = vshrl.u32 %v1350, 7
        %v1352 = vsub.s32 0, %v1351
        %v1353 = vrot.slane %v869, %v1352
        %v1354 = vlaneseq
        %v1355 = vshrl.u32 %v1354, 7
        %v1356 = vsub.s32 0, %v1355
        %v1357 = vrot.slane %v870, %v1356
        %v1366 = vunpack.c.l.b16 %v841
        %v1367 = vunpack.c.l.b16 %v842
        %v1368 = vunpack.c.l.b16 %v843
        %v1369 = vunpack.c.l.b16 %v844
        %v1370 = vpack.c.b16 %v1367, %v1366
        %v1371 = vpack.c.b16 %v1369, %v1368
        %1374 = vmatprep.subr.bf16.mxu0 0
        %1375 = vmatpush1.bf16.msra.mxu0 0
        %1376 = vmatprep.subr.bf16.mxu0 0
        %1377 = vmatpush1.bf16.msra.mxu0 0
        %1378 = vmatprep.subr.bf16.mxu0 0
        %1379 = vmatpush1.bf16.msra.mxu0 0
        %1380 = vmatprep.subr.bf16.mxu0 0
        %1381 = vmatpush1.bf16.msra.mxu0 0
        %1382 = vmatprep.subr.bf16.mxu0 0
        %1383 = vmatpush1.bf16.msra.mxu0 0
        %1384 = vmatprep.subr.bf16.mxu0 0
        %1385 = vmatpush1.bf16.msra.mxu0 0
        %1386 = vmatprep.subr.bf16.mxu0 0
        %1387 = vmatpush1.bf16.msra.mxu0 %v1371
        %1388 = vmatprep.subr.bf16.mxu0 0
        %1389 = vmatpush1.bf16.msra.mxu0 %v1370
        %1390 = vmatprep.subr.bf16.mxu0 0
        %1391 = vmatpush2.bf16.msra.mxu0 0
        %1392 = vmatprep.subr.bf16.mxu0 0
        %1393 = vmatpush2.bf16.msra.mxu0 0
        %1394 = vmatprep.subr.bf16.mxu0 0
        %1395 = vmatpush2.bf16.msra.mxu0 0
        %1396 = vmatprep.subr.bf16.mxu0 0
        %1397 = vmatpush2.bf16.msra.mxu0 0
        %1398 = vmatprep.subr.bf16.mxu0 0
        %1399 = vmatpush2.bf16.msra.mxu0 0
        %1400 = vmatprep.subr.bf16.mxu0 0
        %1401 = vmatpush2.bf16.msra.mxu0 0
        %1402 = vmatprep.subr.bf16.mxu0 0
        %1403 = vmatpush2.bf16.msra.mxu0 0
        %1404 = vmatprep.subr.bf16.mxu0 0
        %1405 = vmatpush2.bf16.msra.mxu0 0
        %1406 = vmatprep.mubr.bf16.mxu0 0
        %1407 = vmatmul.mubr.bf16.gmra.mxu0 %v908
        %v1408 = vpop.f32.mrf.mxu0
        %v1409 = vadd.f32 %v1345, %v1408
        %v1410 = vpop.f32.mrf.mxu0
        %v1411 = vpop.f32.mrf.mxu0
        %v1412 = vpop.f32.mrf.mxu0
        %1413 = vdwg.mxu0
        %v1418 = vunpack.c.l.b16 %v845
        %v1419 = vunpack.c.l.b16 %v846
        %v1420 = vunpack.c.l.b16 %v847
        %v1421 = vunpack.c.l.b16 %v848
        %v1422 = vpack.c.b16 %v1419, %v1418
        %v1423 = vpack.c.b16 %v1421, %v1420
        %1426 = vmatprep.subr.bf16.mxu0 0
        %1427 = vmatpush1.bf16.msra.mxu0 0
        %1428 = vmatprep.subr.bf16.mxu0 0
        %1429 = vmatpush1.bf16.msra.mxu0 0
        %1430 = vmatprep.subr.bf16.mxu0 0
        %1431 = vmatpush1.bf16.msra.mxu0 0
        %1432 = vmatprep.subr.bf16.mxu0 0
        %1433 = vmatpush1.bf16.msra.mxu0 0
        %1434 = vmatprep.subr.bf16.mxu0 0
        %1435 = vmatpush1.bf16.msra.mxu0 0
        %1436 = vmatprep.subr.bf16.mxu0 0
        %1437 = vmatpush1.bf16.msra.mxu0 0
        %1438 = vmatprep.subr.bf16.mxu0 0
        %1439 = vmatpush1.bf16.msra.mxu0 %v1423
        %1440 = vmatprep.subr.bf16.mxu0 0
        %1441 = vmatpush1.bf16.msra.mxu0 %v1422
        %1442 = vmatprep.subr.bf16.mxu0 0
        %1443 = vmatpush2.bf16.msra.mxu0 0
        %1444 = vmatprep.subr.bf16.mxu0 0
        %1445 = vmatpush2.bf16.msra.mxu0 0
        %1446 = vmatprep.subr.bf16.mxu0 0
        %1447 = vmatpush2.bf16.msra.mxu0 0
        %1448 = vmatprep.subr.bf16.mxu0 0
        %1449 = vmatpush2.bf16.msra.mxu0 0
        %1450 = vmatprep.subr.bf16.mxu0 0
        %1451 = vmatpush2.bf16.msra.mxu0 0
        %1452 = vmatprep.subr.bf16.mxu0 0
        %1453 = vmatpush2.bf16.msra.mxu0 0
        %1454 = vmatprep.subr.bf16.mxu0 0
        %1455 = vmatpush2.bf16.msra.mxu0 0
        %1456 = vmatprep.subr.bf16.mxu0 0
        %1457 = vmatpush2.bf16.msra.mxu0 0
        %1458 = vmatprep.mubr.bf16.mxu0 0
        %1459 = vmatmul.mubr.bf16.gmra.mxu0 %v908
        %v1460 = vpop.f32.mrf.mxu0
        %v1461 = vadd.f32 %v1349, %v1460
        %v1462 = vpop.f32.mrf.mxu0
        %v1463 = vpop.f32.mrf.mxu0
        %v1464 = vpop.f32.mrf.mxu0
        %1465 = vdwg.mxu0
        %v1470 = vunpack.c.l.b16 %v849
        %v1471 = vunpack.c.l.b16 %v850
        %v1472 = vunpack.c.l.b16 %v851
        %v1473 = vunpack.c.l.b16 %v852
        %v1474 = vpack.c.b16 %v1471, %v1470
        %v1475 = vpack.c.b16 %v1473, %v1472
        %1478 = vmatprep.subr.bf16.mxu0 0
        %1479 = vmatpush1.bf16.msra.mxu0 0
        %1480 = vmatprep.subr.bf16.mxu0 0
        %1481 = vmatpush1.bf16.msra.mxu0 0
        %1482 = vmatprep.subr.bf16.mxu0 0
        %1483 = vmatpush1.bf16.msra.mxu0 0
        %1484 = vmatprep.subr.bf16.mxu0 0
        %1485 = vmatpush1.bf16.msra.mxu0 0
        %1486 = vmatprep.subr.bf16.mxu0 0
        %1487 = vmatpush1.bf16.msra.mxu0 0
        %1488 = vmatprep.subr.bf16.mxu0 0
        %1489 = vmatpush1.bf16.msra.mxu0 0
        %1490 = vmatprep.subr.bf16.mxu0 0
        %1491 = vmatpush1.bf16.msra.mxu0 %v1475
        %1492 = vmatprep.subr.bf16.mxu0 0
        %1493 = vmatpush1.bf16.msra.mxu0 %v1474
        %1494 = vmatprep.subr.bf16.mxu0 0
        %1495 = vmatpush2.bf16.msra.mxu0 0
        %1496 = vmatprep.subr.bf16.mxu0 0
        %1497 = vmatpush2.bf16.msra.mxu0 0
        %1498 = vmatprep.subr.bf16.mxu0 0
        %1499 = vmatpush2.bf16.msra.mxu0 0
        %1500 = vmatprep.subr.bf16.mxu0 0
        %1501 = vmatpush2.bf16.msra.mxu0 0
        %1502 = vmatprep.subr.bf16.mxu0 0
        %1503 = vmatpush2.bf16.msra.mxu0 0
        %1504 = vmatprep.subr.bf16.mxu0 0
        %1505 = vmatpush2.bf16.msra.mxu0 0
        %1506 = vmatprep.subr.bf16.mxu0 0
        %1507 = vmatpush2.bf16.msra.mxu0 0
        %1508 = vmatprep.subr.bf16.mxu0 0
        %1509 = vmatpush2.bf16.msra.mxu0 0
        %1510 = vmatprep.mubr.bf16.mxu0 0
        %1511 = vmatmul.mubr.bf16.gmra.mxu0 %v908
        %v1512 = vpop.f32.mrf.mxu0
        %v1513 = vadd.f32 %v1353, %v1512
        %v1514 = vpop.f32.mrf.mxu0
        %v1515 = vpop.f32.mrf.mxu0
        %v1516 = vpop.f32.mrf.mxu0
        %1517 = vdwg.mxu0
        %v1522 = vunpack.c.l.b16 %v853
        %v1523 = vunpack.c.l.b16 %v854
        %v1524 = vunpack.c.l.b16 %v855
        %v1525 = vunpack.c.l.b16 %v856
        %v1526 = vpack.c.b16 %v1523, %v1522
        %v1527 = vpack.c.b16 %v1525, %v1524
        %1530 = vmatprep.subr.bf16.mxu0 0
        %1531 = vmatpush1.bf16.msra.mxu0 0
        %1532 = vmatprep.subr.bf16.mxu0 0
        %1533 = vmatpush1.bf16.msra.mxu0 0
        %1534 = vmatprep.subr.bf16.mxu0 0
        %1535 = vmatpush1.bf16.msra.mxu0 0
        %1536 = vmatprep.subr.bf16.mxu0 0
        %1537 = vmatpush1.bf16.msra.mxu0 0
        %1538 = vmatprep.subr.bf16.mxu0 0
        %1539 = vmatpush1.bf16.msra.mxu0 0
        %1540 = vmatprep.subr.bf16.mxu0 0
        %1541 = vmatpush1.bf16.msra.mxu0 0
        %1542 = vmatprep.subr.bf16.mxu0 0
        %1543 = vmatpush1.bf16.msra.mxu0 %v1527
        %1544 = vmatprep.subr.bf16.mxu0 0
        %1545 = vmatpush1.bf16.msra.mxu0 %v1526
        %1546 = vmatprep.subr.bf16.mxu0 0
        %1547 = vmatpush2.bf16.msra.mxu0 0
        %1548 = vmatprep.subr.bf16.mxu0 0
        %1549 = vmatpush2.bf16.msra.mxu0 0
        %1550 = vmatprep.subr.bf16.mxu0 0
        %1551 = vmatpush2.bf16.msra.mxu0 0
        %1552 = vmatprep.subr.bf16.mxu0 0
        %1553 = vmatpush2.bf16.msra.mxu0 0
        %1554 = vmatprep.subr.bf16.mxu0 0
        %1555 = vmatpush2.bf16.msra.mxu0 0
        %1556 = vmatprep.subr.bf16.mxu0 0
        %1557 = vmatpush2.bf16.msra.mxu0 0
        %1558 = vmatprep.subr.bf16.mxu0 0
        %1559 = vmatpush2.bf16.msra.mxu0 0
        %1560 = vmatprep.subr.bf16.mxu0 0
        %1561 = vmatpush2.bf16.msra.mxu0 0
        %1562 = vmatprep.mubr.bf16.mxu0 0
        %1563 = vmatmul.mubr.bf16.gmra.mxu0 %v908
        %v1564 = vpop.f32.mrf.mxu0
        %v1565 = vadd.f32 %v1357, %v1564
        %v1566 = vpop.f32.mrf.mxu0
        %v1567 = vpop.f32.mrf.mxu0
        %v1568 = vpop.f32.mrf.mxu0
        %1569 = vdwg.mxu0
        %v1570 = vpack.c.bf16 %v945, %v945
        %v1571 = vpack.c.bf16 %v997, %v997
        %v1572 = vpack.c.bf16 %v1049, %v1049
        %v1573 = vpack.c.bf16 %v1101, %v1101
        %v1574 = vpack.c.bf16 %v1177, %v1177
        %v1575 = vpack.c.bf16 %v1229, %v1229
        %v1576 = vpack.c.bf16 %v1281, %v1281
        %v1577 = vpack.c.bf16 %v1333, %v1333
        %vm1578 = vcmask 64512
        %v1580 = vsel %vm1578, %v1570, 0
        %v1583 = vsel %vm1578, %v1574, 0
        %1585 = vmatprep.subr.bf16.mxu0 0
        %1586 = vmatpush1.bf16.xpose.msra.mxu0 0
        %1587 = vmatprep.subr.bf16.mxu0 0
        %1588 = vmatpush1.bf16.xpose.msra.mxu0 0
        %1589 = vmatprep.subr.bf16.mxu0 0
        %1590 = vmatpush1.bf16.xpose.msra.mxu0 0
        %1591 = vmatprep.subr.bf16.mxu0 0
        %1592 = vmatpush1.bf16.xpose.msra.mxu0 0
        %1593 = vmatprep.subr.bf16.mxu0 0
        %1594 = vmatpush1.bf16.xpose.msra.mxu0 0
        %1595 = vmatprep.subr.bf16.mxu0 0
        %1596 = vmatpush1.bf16.xpose.msra.mxu0 0
        %1597 = vmatprep.subr.bf16.mxu0 0
        %1598 = vmatpush1.bf16.xpose.msra.mxu0 0
        %1599 = vmatprep.subr.bf16.mxu0 0
        %1600 = vmatpush1.bf16.xpose.msra.mxu0 %v1583
        %1601 = vmatprep.subr.bf16.mxu0 0
        %1602 = vmatpush2.bf16.xpose.msra.mxu0 0
        %1603 = vmatprep.subr.bf16.mxu0 0
        %1604 = vmatpush2.bf16.xpose.msra.mxu0 0
        %1605 = vmatprep.subr.bf16.mxu0 0
        %1606 = vmatpush2.bf16.xpose.msra.mxu0 0
        %1607 = vmatprep.subr.bf16.mxu0 0
        %1608 = vmatpush2.bf16.xpose.msra.mxu0 0
        %1609 = vmatprep.subr.bf16.mxu0 0
        %1610 = vmatpush2.bf16.xpose.msra.mxu0 0
        %1611 = vmatprep.subr.bf16.mxu0 0
        %1612 = vmatpush2.bf16.xpose.msra.mxu0 0
        %1613 = vmatprep.subr.bf16.mxu0 0
        %1614 = vmatpush2.bf16.xpose.msra.mxu0 0
        %1615 = vmatprep.subr.bf16.mxu0 0
        %1616 = vmatpush2.bf16.xpose.msra.mxu0 0
        %1617 = vmatprep.mubr.bf16.mxu0 0
        %1618 = vmatmul.mubr.bf16.gmra.mxu0 %v1580
        %v1619 = vpop.f32.mrf.mxu0
        %v1620 = vadd.f32 %v766, %v1619
        %v1621 = vpop.f32.mrf.mxu0
        %v1622 = vpop.f32.mrf.mxu0
        %v1623 = vpop.f32.mrf.mxu0
        %1624 = vdwg.mxu0
        %v1626 = vsel %vm1578, %v1571, 0
        %v1629 = vsel %vm1578, %v1575, 0
        %1631 = vmatprep.subr.bf16.mxu0 0
        %1632 = vmatpush1.bf16.xpose.msra.mxu0 0
        %1633 = vmatprep.subr.bf16.mxu0 0
        %1634 = vmatpush1.bf16.xpose.msra.mxu0 0
        %1635 = vmatprep.subr.bf16.mxu0 0
        %1636 = vmatpush1.bf16.xpose.msra.mxu0 0
        %1637 = vmatprep.subr.bf16.mxu0 0
        %1638 = vmatpush1.bf16.xpose.msra.mxu0 0
        %1639 = vmatprep.subr.bf16.mxu0 0
        %1640 = vmatpush1.bf16.xpose.msra.mxu0 0
        %1641 = vmatprep.subr.bf16.mxu0 0
        %1642 = vmatpush1.bf16.xpose.msra.mxu0 0
        %1643 = vmatprep.subr.bf16.mxu0 0
        %1644 = vmatpush1.bf16.xpose.msra.mxu0 0
        %1645 = vmatprep.subr.bf16.mxu0 0
        %1646 = vmatpush1.bf16.xpose.msra.mxu0 %v1629
        %1647 = vmatprep.subr.bf16.mxu0 0
        %1648 = vmatpush2.bf16.xpose.msra.mxu0 0
        %1649 = vmatprep.subr.bf16.mxu0 0
        %1650 = vmatpush2.bf16.xpose.msra.mxu0 0
        %1651 = vmatprep.subr.bf16.mxu0 0
        %1652 = vmatpush2.bf16.xpose.msra.mxu0 0
        %1653 = vmatprep.subr.bf16.mxu0 0
        %1654 = vmatpush2.bf16.xpose.msra.mxu0 0
        %1655 = vmatprep.subr.bf16.mxu0 0
        %1656 = vmatpush2.bf16.xpose.msra.mxu0 0
        %1657 = vmatprep.subr.bf16.mxu0 0
        %1658 = vmatpush2.bf16.xpose.msra.mxu0 0
        %1659 = vmatprep.subr.bf16.mxu0 0
        %1660 = vmatpush2.bf16.xpose.msra.mxu0 0
        %1661 = vmatprep.subr.bf16.mxu0 0
        %1662 = vmatpush2.bf16.xpose.msra.mxu0 0
        %1663 = vmatprep.mubr.bf16.mxu0 0
        %1664 = vmatmul.mubr.bf16.gmra.mxu0 %v1626
        %v1665 = vpop.f32.mrf.mxu0
        %v1666 = vadd.f32 %v766, %v1665
        %v1667 = vpop.f32.mrf.mxu0
        %v1668 = vpop.f32.mrf.mxu0
        %v1669 = vpop.f32.mrf.mxu0
        %1670 = vdwg.mxu0
        %v1672 = vsel %vm1578, %v1572, 0
        %v1675 = vsel %vm1578, %v1576, 0
        %1677 = vmatprep.subr.bf16.mxu0 0
        %1678 = vmatpush1.bf16.xpose.msra.mxu0 0
        %1679 = vmatprep.subr.bf16.mxu0 0
        %1680 = vmatpush1.bf16.xpose.msra.mxu0 0
        %1681 = vmatprep.subr.bf16.mxu0 0
        %1682 = vmatpush1.bf16.xpose.msra.mxu0 0
        %1683 = vmatprep.subr.bf16.mxu0 0
        %1684 = vmatpush1.bf16.xpose.msra.mxu0 0
        %1685 = vmatprep.subr.bf16.mxu0 0
        %1686 = vmatpush1.bf16.xpose.msra.mxu0 0
        %1687 = vmatprep.subr.bf16.mxu0 0
        %1688 = vmatpush1.bf16.xpose.msra.mxu0 0
        %1689 = vmatprep.subr.bf16.mxu0 0
        %1690 = vmatpush1.bf16.xpose.msra.mxu0 0
        %1691 = vmatprep.subr.bf16.mxu0 0
        %1692 = vmatpush1.bf16.xpose.msra.mxu0 %v1675
        %1693 = vmatprep.subr.bf16.mxu0 0
        %1694 = vmatpush2.bf16.xpose.msra.mxu0 0
        %1695 = vmatprep.subr.bf16.mxu0 0
        %1696 = vmatpush2.bf16.xpose.msra.mxu0 0
        %1697 = vmatprep.subr.bf16.mxu0 0
        %1698 = vmatpush2.bf16.xpose.msra.mxu0 0
        %1699 = vmatprep.subr.bf16.mxu0 0
        %1700 = vmatpush2.bf16.xpose.msra.mxu0 0
        %1701 = vmatprep.subr.bf16.mxu0 0
        %1702 = vmatpush2.bf16.xpose.msra.mxu0 0
        %1703 = vmatprep.subr.bf16.mxu0 0
        %1704 = vmatpush2.bf16.xpose.msra.mxu0 0
        %1705 = vmatprep.subr.bf16.mxu0 0
        %1706 = vmatpush2.bf16.xpose.msra.mxu0 0
        %1707 = vmatprep.subr.bf16.mxu0 0
        %1708 = vmatpush2.bf16.xpose.msra.mxu0 0
        %1709 = vmatprep.mubr.bf16.mxu0 0
        %1710 = vmatmul.mubr.bf16.gmra.mxu0 %v1672
        %v1711 = vpop.f32.mrf.mxu0
        %v1712 = vadd.f32 %v766, %v1711
        %v1713 = vpop.f32.mrf.mxu0
        %v1714 = vpop.f32.mrf.mxu0
        %v1715 = vpop.f32.mrf.mxu0
        %1716 = vdwg.mxu0
        %v1718 = vsel %vm1578, %v1573, 0
        %v1721 = vsel %vm1578, %v1577, 0
        %1723 = vmatprep.subr.bf16.mxu0 0
        %1724 = vmatpush1.bf16.xpose.msra.mxu0 0
        %1725 = vmatprep.subr.bf16.mxu0 0
        %1726 = vmatpush1.bf16.xpose.msra.mxu0 0
        %1727 = vmatprep.subr.bf16.mxu0 0
        %1728 = vmatpush1.bf16.xpose.msra.mxu0 0
        %1729 = vmatprep.subr.bf16.mxu0 0
        %1730 = vmatpush1.bf16.xpose.msra.mxu0 0
        %1731 = vmatprep.subr.bf16.mxu0 0
        %1732 = vmatpush1.bf16.xpose.msra.mxu0 0
        %1733 = vmatprep.subr.bf16.mxu0 0
        %1734 = vmatpush1.bf16.xpose.msra.mxu0 0
        %1735 = vmatprep.subr.bf16.mxu0 0
        %1736 = vmatpush1.bf16.xpose.msra.mxu0 0
        %1737 = vmatprep.subr.bf16.mxu0 0
        %1738 = vmatpush1.bf16.xpose.msra.mxu0 %v1721
        %1739 = vmatprep.subr.bf16.mxu0 0
        %1740 = vmatpush2.bf16.xpose.msra.mxu0 0
        %1741 = vmatprep.subr.bf16.mxu0 0
        %1742 = vmatpush2.bf16.xpose.msra.mxu0 0
        %1743 = vmatprep.subr.bf16.mxu0 0
        %1744 = vmatpush2.bf16.xpose.msra.mxu0 0
        %1745 = vmatprep.subr.bf16.mxu0 0
        %1746 = vmatpush2.bf16.xpose.msra.mxu0 0
        %1747 = vmatprep.subr.bf16.mxu0 0
        %1748 = vmatpush2.bf16.xpose.msra.mxu0 0
        %1749 = vmatprep.subr.bf16.mxu0 0
        %1750 = vmatpush2.bf16.xpose.msra.mxu0 0
        %1751 = vmatprep.subr.bf16.mxu0 0
        %1752 = vmatpush2.bf16.xpose.msra.mxu0 0
        %1753 = vmatprep.subr.bf16.mxu0 0
        %1754 = vmatpush2.bf16.xpose.msra.mxu0 0
        %1755 = vmatprep.mubr.bf16.mxu0 0
        %1756 = vmatmul.mubr.bf16.gmra.mxu0 %v1718
        %v1757 = vpop.f32.mrf.mxu0
        %v1758 = vadd.f32 %v766, %v1757
        %v1759 = vpop.f32.mrf.mxu0
        %v1760 = vpop.f32.mrf.mxu0
        %v1761 = vpop.f32.mrf.mxu0
        %1762 = vdwg.mxu0
        %v1763 = vsel %vm1578, %v1620, -inf
        %1764 = vmax.xlane.f32.xlu0 %v1763
        %v1765 = vpop.xlane.xlu0 %1764
        %v1766 = vsel %vm1578, %v1666, -inf
        %1767 = vmax.xlane.f32.xlu0 %v1766
        %v1768 = vpop.xlane.xlu0 %1767
        %v1769 = vsel %vm1578, %v1712, -inf
        %1770 = vmax.xlane.f32.xlu0 %v1769
        %v1771 = vpop.xlane.xlu0 %1770
        %v1772 = vsel %vm1578, %v1758, -inf
        %1773 = vmax.xlane.f32.xlu0 %v1772
        %v1774 = vpop.xlane.xlu0 %1773
        %v1775 = vsub.f32 %v1620, %v1765
        %v1776 = vsub.f32 %v1666, %v1768
        %v1777 = vsub.f32 %v1712, %v1771
        %v1778 = vsub.f32 %v1758, %v1774
        %v1779 = vmul.f32 %v1775, 1.442695
        %v1780 = vpow.pop %v1779
        %v1781 = vmul.f32 %v1776, 1.442695
        %v1782 = vpow.pop %v1781
        %v1783 = vmul.f32 %v1777, 1.442695
        %v1784 = vpow.pop %v1783
        %v1785 = vmul.f32 %v1778, 1.442695
        %v1786 = vpow.pop %v1785
        %v1787 = vsel %vm1578, %v1780, 0.0
        %1788 = vadd.xlane.f32.xlu0 %v1787
        %v1789 = vpop.xlane.xlu0 %1788
        %v1790 = vsel %vm1578, %v1782, 0.0
        %1791 = vadd.xlane.f32.xlu0 %v1790
        %v1792 = vpop.xlane.xlu0 %1791
        %v1793 = vsel %vm1578, %v1784, 0.0
        %1794 = vadd.xlane.f32.xlu0 %v1793
        %v1795 = vpop.xlane.xlu0 %1794
        %v1796 = vsel %vm1578, %v1786, 0.0
        %1797 = vadd.xlane.f32.xlu0 %v1796
        %v1798 = vpop.xlane.xlu0 %1797
        %v1799 = vrcp.pop %v1789
        %v1800 = vrcp.pop %v1792
        %v1801 = vrcp.pop %v1795
        %v1802 = vrcp.pop %v1798
        %v1803 = vmul.f32 %v1780, %v1799
        %v1804 = vmul.f32 %v1782, %v1800
        %v1805 = vmul.f32 %v1784, %v1801
        %v1806 = vmul.f32 %v1786, %v1802
        %v1807 = vpack.c.bf16 %v1803, %v1803
        %v1808 = vpack.c.bf16 %v1804, %v1804
        %v1809 = vpack.c.bf16 %v1805, %v1805
        %v1810 = vpack.c.bf16 %v1806, %v1806
        %v1811 = vpack.c.bf16 %v1409, %v1409
        %v1812 = vpack.c.bf16 %v1461, %v1461
        %v1813 = vpack.c.bf16 %v1513, %v1513
        %v1814 = vpack.c.bf16 %v1565, %v1565
        %v1816 = vsel %vm1578, %v1807, 0
        %vm1818 = vcmask 1043456
        %v1820 = vsel %vm1818, %v1811, 0
        %1822 = vmatprep.subr.bf16.mxu0 0
        %1823 = vmatpush1.bf16.msra.mxu0 0
        %1824 = vmatprep.subr.bf16.mxu0 0
        %1825 = vmatpush1.bf16.msra.mxu0 0
        %1826 = vmatprep.subr.bf16.mxu0 0
        %1827 = vmatpush1.bf16.msra.mxu0 0
        %1828 = vmatprep.subr.bf16.mxu0 0
        %1829 = vmatpush1.bf16.msra.mxu0 0
        %1830 = vmatprep.subr.bf16.mxu0 0
        %1831 = vmatpush1.bf16.msra.mxu0 0
        %1832 = vmatprep.subr.bf16.mxu0 0
        %1833 = vmatpush1.bf16.msra.mxu0 0
        %1834 = vmatprep.subr.bf16.mxu0 0
        %1835 = vmatpush1.bf16.msra.mxu0 0
        %1836 = vmatprep.subr.bf16.mxu0 0
        %1837 = vmatpush1.bf16.msra.mxu0 %v1820
        %1838 = vmatprep.subr.bf16.mxu0 0
        %1839 = vmatpush2.bf16.msra.mxu0 0
        %1840 = vmatprep.subr.bf16.mxu0 0
        %1841 = vmatpush2.bf16.msra.mxu0 0
        %1842 = vmatprep.subr.bf16.mxu0 0
        %1843 = vmatpush2.bf16.msra.mxu0 0
        %1844 = vmatprep.subr.bf16.mxu0 0
        %1845 = vmatpush2.bf16.msra.mxu0 0
        %1846 = vmatprep.subr.bf16.mxu0 0
        %1847 = vmatpush2.bf16.msra.mxu0 0
        %1848 = vmatprep.subr.bf16.mxu0 0
        %1849 = vmatpush2.bf16.msra.mxu0 0
        %1850 = vmatprep.subr.bf16.mxu0 0
        %1851 = vmatpush2.bf16.msra.mxu0 0
        %1852 = vmatprep.subr.bf16.mxu0 0
        %1853 = vmatpush2.bf16.msra.mxu0 0
        %1854 = vmatprep.mubr.bf16.mxu0 0
        %1855 = vmatmul.mubr.bf16.gmra.mxu0 %v1816
        %v1856 = vpop.f32.mrf.mxu0
        %v1857 = vadd.f32 0.0, %v1856
        %v1858 = vpop.f32.mrf.mxu0
        %v1859 = vpop.f32.mrf.mxu0
        %v1860 = vpop.f32.mrf.mxu0
        %1861 = vdwg.mxu0
        %v1863 = vsel %vm1578, %v1808, 0
        %v1866 = vsel %vm1818, %v1812, 0
        %1868 = vmatprep.subr.bf16.mxu0 0
        %1869 = vmatpush1.bf16.msra.mxu0 0
        %1870 = vmatprep.subr.bf16.mxu0 0
        %1871 = vmatpush1.bf16.msra.mxu0 0
        %1872 = vmatprep.subr.bf16.mxu0 0
        %1873 = vmatpush1.bf16.msra.mxu0 0
        %1874 = vmatprep.subr.bf16.mxu0 0
        %1875 = vmatpush1.bf16.msra.mxu0 0
        %1876 = vmatprep.subr.bf16.mxu0 0
        %1877 = vmatpush1.bf16.msra.mxu0 0
        %1878 = vmatprep.subr.bf16.mxu0 0
        %1879 = vmatpush1.bf16.msra.mxu0 0
        %1880 = vmatprep.subr.bf16.mxu0 0
        %1881 = vmatpush1.bf16.msra.mxu0 0
        %1882 = vmatprep.subr.bf16.mxu0 0
        %1883 = vmatpush1.bf16.msra.mxu0 %v1866
        %1884 = vmatprep.subr.bf16.mxu0 0
        %1885 = vmatpush2.bf16.msra.mxu0 0
        %1886 = vmatprep.subr.bf16.mxu0 0
        %1887 = vmatpush2.bf16.msra.mxu0 0
        %1888 = vmatprep.subr.bf16.mxu0 0
        %1889 = vmatpush2.bf16.msra.mxu0 0
        %1890 = vmatprep.subr.bf16.mxu0 0
        %1891 = vmatpush2.bf16.msra.mxu0 0
        %1892 = vmatprep.subr.bf16.mxu0 0
        %1893 = vmatpush2.bf16.msra.mxu0 0
        %1894 = vmatprep.subr.bf16.mxu0 0
        %1895 = vmatpush2.bf16.msra.mxu0 0
        %1896 = vmatprep.subr.bf16.mxu0 0
        %1897 = vmatpush2.bf16.msra.mxu0 0
        %1898 = vmatprep.subr.bf16.mxu0 0
        %1899 = vmatpush2.bf16.msra.mxu0 0
        %1900 = vmatprep.mubr.bf16.mxu0 0
        %1901 = vmatmul.mubr.bf16.gmra.mxu0 %v1863
        %v1902 = vpop.f32.mrf.mxu0
        %v1903 = vadd.f32 0.0, %v1902
        %v1904 = vpop.f32.mrf.mxu0
        %v1905 = vpop.f32.mrf.mxu0
        %v1906 = vpop.f32.mrf.mxu0
        %1907 = vdwg.mxu0
        %v1909 = vsel %vm1578, %v1809, 0
        %v1912 = vsel %vm1818, %v1813, 0
        %1914 = vmatprep.subr.bf16.mxu0 0
        %1915 = vmatpush1.bf16.msra.mxu0 0
        %1916 = vmatprep.subr.bf16.mxu0 0
        %1917 = vmatpush1.bf16.msra.mxu0 0
        %1918 = vmatprep.subr.bf16.mxu0 0
        %1919 = vmatpush1.bf16.msra.mxu0 0
        %1920 = vmatprep.subr.bf16.mxu0 0
        %1921 = vmatpush1.bf16.msra.mxu0 0
        %1922 = vmatprep.subr.bf16.mxu0 0
        %1923 = vmatpush1.bf16.msra.mxu0 0
        %1924 = vmatprep.subr.bf16.mxu0 0
        %1925 = vmatpush1.bf16.msra.mxu0 0
        %1926 = vmatprep.subr.bf16.mxu0 0
        %1927 = vmatpush1.bf16.msra.mxu0 0
        %1928 = vmatprep.subr.bf16.mxu0 0
        %1929 = vmatpush1.bf16.msra.mxu0 %v1912
        %1930 = vmatprep.subr.bf16.mxu0 0
        %1931 = vmatpush2.bf16.msra.mxu0 0
        %1932 = vmatprep.subr.bf16.mxu0 0
        %1933 = vmatpush2.bf16.msra.mxu0 0
        %1934 = vmatprep.subr.bf16.mxu0 0
        %1935 = vmatpush2.bf16.msra.mxu0 0
        %1936 = vmatprep.subr.bf16.mxu0 0
        %1937 = vmatpush2.bf16.msra.mxu0 0
        %1938 = vmatprep.subr.bf16.mxu0 0
        %1939 = vmatpush2.bf16.msra.mxu0 0
        %1940 = vmatprep.subr.bf16.mxu0 0
        %1941 = vmatpush2.bf16.msra.mxu0 0
        %1942 = vmatprep.subr.bf16.mxu0 0
        %1943 = vmatpush2.bf16.msra.mxu0 0
        %1944 = vmatprep.subr.bf16.mxu0 0
        %1945 = vmatpush2.bf16.msra.mxu0 0
        %1946 = vmatprep.mubr.bf16.mxu0 0
        %1947 = vmatmul.mubr.bf16.gmra.mxu0 %v1909
        %v1948 = vpop.f32.mrf.mxu0
        %v1949 = vadd.f32 0.0, %v1948
        %v1950 = vpop.f32.mrf.mxu0
        %v1951 = vpop.f32.mrf.mxu0
        %v1952 = vpop.f32.mrf.mxu0
        %1953 = vdwg.mxu0
        %v1955 = vsel %vm1578, %v1810, 0
        %v1958 = vsel %vm1818, %v1814, 0
        %1960 = vmatprep.subr.bf16.mxu0 0
        %1961 = vmatpush1.bf16.msra.mxu0 0
        %1962 = vmatprep.subr.bf16.mxu0 0
        %1963 = vmatpush1.bf16.msra.mxu0 0
        %1964 = vmatprep.subr.bf16.mxu0 0
        %1965 = vmatpush1.bf16.msra.mxu0 0
        %1966 = vmatprep.subr.bf16.mxu0 0
        %1967 = vmatpush1.bf16.msra.mxu0 0
        %1968 = vmatprep.subr.bf16.mxu0 0
        %1969 = vmatpush1.bf16.msra.mxu0 0
        %1970 = vmatprep.subr.bf16.mxu0 0
        %1971 = vmatpush1.bf16.msra.mxu0 0
        %1972 = vmatprep.subr.bf16.mxu0 0
        %1973 = vmatpush1.bf16.msra.mxu0 0
        %1974 = vmatprep.subr.bf16.mxu0 0
        %1975 = vmatpush1.bf16.msra.mxu0 %v1958
        %1976 = vmatprep.subr.bf16.mxu0 0
        %1977 = vmatpush2.bf16.msra.mxu0 0
        %1978 = vmatprep.subr.bf16.mxu0 0
        %1979 = vmatpush2.bf16.msra.mxu0 0
        %1980 = vmatprep.subr.bf16.mxu0 0
        %1981 = vmatpush2.bf16.msra.mxu0 0
        %1982 = vmatprep.subr.bf16.mxu0 0
        %1983 = vmatpush2.bf16.msra.mxu0 0
        %1984 = vmatprep.subr.bf16.mxu0 0
        %1985 = vmatpush2.bf16.msra.mxu0 0
        %1986 = vmatprep.subr.bf16.mxu0 0
        %1987 = vmatpush2.bf16.msra.mxu0 0
        %1988 = vmatprep.subr.bf16.mxu0 0
        %1989 = vmatpush2.bf16.msra.mxu0 0
        %1990 = vmatprep.subr.bf16.mxu0 0
        %1991 = vmatpush2.bf16.msra.mxu0 0
        %1992 = vmatprep.mubr.bf16.mxu0 0
        %1993 = vmatmul.mubr.bf16.gmra.mxu0 %v1955
        %v1994 = vpop.f32.mrf.mxu0
        %v1995 = vadd.f32 0.0, %v1994
        %v1996 = vpop.f32.mrf.mxu0
        %v1997 = vpop.f32.mrf.mxu0
        %v1998 = vpop.f32.mrf.mxu0
        %1999 = vdwg.mxu0
        %2000 = vst.msk [vmem:[#allocation3] sm:$0xff] %vm1578, %v1857
        %2002 = vrot.lane.b32.xlu0 %v1903, 8
        %v2003 = vpop.permute.xlu0 %2002
        %vm2005 = vcmask 130112
        %2006 = vst.msk [vmem:[#allocation3] sm:$0xff] %vm2005, %v2003
        %2008 = vrot.lane.b32.xlu0 %v1949, 16
        %v2009 = vpop.permute.xlu0 %2008
        %vm2011 = vcmask 195712
        %2012 = vst.msk [vmem:[#allocation3] sm:$0xff] %vm2011, %v2009
        %2014 = vrot.lane.b32.xlu0 %v1995, 24
        %v2015 = vpop.permute.xlu0 %2014
        %vm2017 = vcmask 261312
        %2018 = vst.msk [vmem:[#allocation3] sm:$0xff] %vm2017, %v2015
        %v2019 = vld [vmem:[#allocation3] sm:$0xff]
        %s2020 = smul.u32 %s768, 4
        %s2021 = smul.addr %s2020, 4
        %s2022 = scalar_lea.vmem %s10, %s2021
        %v2023 = vld [vmem:[%s2022] sm:$0xf]
        %v2024 = vld [vmem:[%s2022 + $0x4] sm:$0xf]
        %v2025 = vld [vmem:[%s2022 + $0x8] sm:$0xf]
        %v2026 = vld [vmem:[%s2022 + $0xc] sm:$0xf]
        %v2027 = vpack.c.bf16 %v2019, %v2019
        %v2032 = vunpack.c.l.b16 %v2023
        %v2033 = vunpack.c.l.b16 %v2024
        %v2034 = vunpack.c.l.b16 %v2025
        %v2035 = vunpack.c.l.b16 %v2026
        %v2036 = vpack.c.b16 %v2033, %v2032
        %v2037 = vpack.c.b16 %v2035, %v2034
        %v2041 = vsel %vm734, %v2027, 0
        %2043 = vmatprep.subr.bf16.mxu0 0
        %2044 = vmatpush1.bf16.msra.mxu0 0
        %2045 = vmatprep.subr.bf16.mxu0 0
        %2046 = vmatpush1.bf16.msra.mxu0 0
        %2047 = vmatprep.subr.bf16.mxu0 0
        %2048 = vmatpush1.bf16.msra.mxu0 0
        %2049 = vmatprep.subr.bf16.mxu0 0
        %2050 = vmatpush1.bf16.msra.mxu0 0
        %2051 = vmatprep.subr.bf16.mxu0 0
        %2052 = vmatpush1.bf16.msra.mxu0 0
        %2053 = vmatprep.subr.bf16.mxu0 0
        %2054 = vmatpush1.bf16.msra.mxu0 0
        %2055 = vmatprep.subr.bf16.mxu0 0
        %2056 = vmatpush1.bf16.msra.mxu0 %v2037
        %2057 = vmatprep.subr.bf16.mxu0 0
        %2058 = vmatpush1.bf16.msra.mxu0 %v2036
        %2059 = vmatprep.subr.bf16.mxu0 0
        %2060 = vmatpush2.bf16.msra.mxu0 0
        %2061 = vmatprep.subr.bf16.mxu0 0
        %2062 = vmatpush2.bf16.msra.mxu0 0
        %2063 = vmatprep.subr.bf16.mxu0 0
        %2064 = vmatpush2.bf16.msra.mxu0 0
        %2065 = vmatprep.subr.bf16.mxu0 0
        %2066 = vmatpush2.bf16.msra.mxu0 0
        %2067 = vmatprep.subr.bf16.mxu0 0
        %2068 = vmatpush2.bf16.msra.mxu0 0
        %2069 = vmatprep.subr.bf16.mxu0 0
        %2070 = vmatpush2.bf16.msra.mxu0 0
        %2071 = vmatprep.subr.bf16.mxu0 0
        %2072 = vmatpush2.bf16.msra.mxu0 0
        %2073 = vmatprep.subr.bf16.mxu0 0
        %2074 = vmatpush2.bf16.msra.mxu0 0
        %2075 = vmatprep.mubr.bf16.mxu0 0
        %2076 = vmatmul.mubr.bf16.gmra.mxu0 %v2041
        %v2077 = vpop.f32.mrf.mxu0
        %v2078 = vadd.f32 0.0, %v2077
        %v2079 = vpop.f32.mrf.mxu0
        %v2080 = vpop.f32.mrf.mxu0
        %v2081 = vpop.f32.mrf.mxu0
        %2082 = vdwg.mxu0
        %v2083 = vadd.f32 %v773, %v2078
        %s2084 = scalar_lea.vmem %s11, %s768
        %v2085 = vld [vmem:[%s2084] sm:$0x1]
        %v2087 = vlaneseq
        %v2088 = vshrl.u32 %v2087, 7
        %v2089 = vsub.s32 0, %v2088
        %v2090 = vrot.slane %v2085, %v2089
        %v2092 = vadd.f32 %v2083, %v2090
        %s2093 = scalar_lea.vmem %s12, %s768
        %v2094 = vld [vmem:[%s2093] sm:$0x1]
        %s2095 = scalar_lea.vmem %s13, %s768
        %v2096 = vld [vmem:[%s2095] sm:$0x1]
        %v2097 = vsel %vm734, %v2092, 0.0
        %2098 = vadd.xlane.f32.xlu0 %v2097
        %v2099 = vpop.xlane.xlu0 %2098
        %v2100 = vmul.f32 %v2099, %v738
        %v2101 = vsub.f32 %v2092, %v2100
        %v2102 = vmul.f32 %v2101, %v2101
        %v2103 = vsel %vm734, %v2102, 0.0
        %2104 = vadd.xlane.f32.xlu0 %v2103
        %v2105 = vpop.xlane.xlu0 %2104
        %v2106 = vmul.f32 %v2105, %v738
        %v2107 = vadd.f32 %v2106, 1e-05
        %v2108 = vrsqrt.pop %v2107
        %v2109 = vmul.f32 %v2101, %v2108
        %v2111 = vlaneseq
        %v2112 = vshrl.u32 %v2111, 7
        %v2113 = vsub.s32 0, %v2112
        %v2114 = vrot.slane %v2094, %v2113
        %v2116 = vmul.f32 %v2109, %v2114
        %v2118 = vlaneseq
        %v2119 = vshrl.u32 %v2118, 7
        %v2120 = vsub.s32 0, %v2119
        %v2121 = vrot.slane %v2096, %v2120
        %v2123 = vadd.f32 %v2116, %v2121
        %s2124 = smul.addr %s2020, 4
        %s2125 = scalar_lea.vmem %s14, %s2124
        %v2126 = vld [vmem:[%s2125] sm:$0xf]
        %v2127 = vld [vmem:[%s2125 + $0x4] sm:$0xf]
        %v2128 = vld [vmem:[%s2125 + $0x8] sm:$0xf]
        %v2129 = vld [vmem:[%s2125 + $0xc] sm:$0xf]
        %v2130 = vpack.c.bf16 %v2123, %v2123
        %s2131 = scalar_lea.vmem %s15, %s768
        %v2132 = vld [vmem:[%s2131] sm:$0x1]
        %v2134 = vlaneseq
        %v2135 = vshrl.u32 %v2134, 7
        %v2136 = vsub.s32 0, %v2135
        %v2137 = vrot.slane %v2132, %v2136
        %v2143 = vunpack.c.l.b16 %v2126
        %v2144 = vunpack.c.l.b16 %v2127
        %v2145 = vunpack.c.l.b16 %v2128
        %v2146 = vunpack.c.l.b16 %v2129
        %v2147 = vpack.c.b16 %v2144, %v2143
        %v2148 = vpack.c.b16 %v2146, %v2145
        %v2152 = vsel %vm734, %v2130, 0
        %2154 = vmatprep.subr.bf16.mxu0 0
        %2155 = vmatpush1.bf16.msra.mxu0 0
        %2156 = vmatprep.subr.bf16.mxu0 0
        %2157 = vmatpush1.bf16.msra.mxu0 0
        %2158 = vmatprep.subr.bf16.mxu0 0
        %2159 = vmatpush1.bf16.msra.mxu0 0
        %2160 = vmatprep.subr.bf16.mxu0 0
        %2161 = vmatpush1.bf16.msra.mxu0 0
        %2162 = vmatprep.subr.bf16.mxu0 0
        %2163 = vmatpush1.bf16.msra.mxu0 0
        %2164 = vmatprep.subr.bf16.mxu0 0
        %2165 = vmatpush1.bf16.msra.mxu0 0
        %2166 = vmatprep.subr.bf16.mxu0 0
        %2167 = vmatpush1.bf16.msra.mxu0 %v2148
        %2168 = vmatprep.subr.bf16.mxu0 0
        %2169 = vmatpush1.bf16.msra.mxu0 %v2147
        %2170 = vmatprep.subr.bf16.mxu0 0
        %2171 = vmatpush2.bf16.msra.mxu0 0
        %2172 = vmatprep.subr.bf16.mxu0 0
        %2173 = vmatpush2.bf16.msra.mxu0 0
        %2174 = vmatprep.subr.bf16.mxu0 0
        %2175 = vmatpush2.bf16.msra.mxu0 0
        %2176 = vmatprep.subr.bf16.mxu0 0
        %2177 = vmatpush2.bf16.msra.mxu0 0
        %2178 = vmatprep.subr.bf16.mxu0 0
        %2179 = vmatpush2.bf16.msra.mxu0 0
        %2180 = vmatprep.subr.bf16.mxu0 0
        %2181 = vmatpush2.bf16.msra.mxu0 0
        %2182 = vmatprep.subr.bf16.mxu0 0
        %2183 = vmatpush2.bf16.msra.mxu0 0
        %2184 = vmatprep.subr.bf16.mxu0 0
        %2185 = vmatpush2.bf16.msra.mxu0 0
        %2186 = vmatprep.mubr.bf16.mxu0 0
        %2187 = vmatmul.mubr.bf16.gmra.mxu0 %v2152
        %v2188 = vpop.f32.mrf.mxu0
        %v2189 = vadd.f32 %v2137, %v2188
        %v2190 = vpop.f32.mrf.mxu0
        %v2191 = vpop.f32.mrf.mxu0
        %v2192 = vpop.f32.mrf.mxu0
        %2193 = vdwg.mxu0
        %v2194 = vmul.f32 %v2189, 1.702
        %v2195 = vxor.u32 %v2194, 2147483648
        %v2196 = vmul.f32 %v2195, 1.442695
        %v2197 = vpow.pop %v2196
        %v2198 = vadd.f32 %v2197, 1.0
        %v2199 = vrcp.pop %v2198
        %v2200 = vmul.f32 1.0, %v2199
        %v2201 = vmul.f32 %v2189, %v2200
        %s2202 = smul.u32 %s768, 8
        %s2203 = smul.addr %s2202, 4
        %s2204 = scalar_lea.vmem %s16, %s2203
        %v2205 = vld [vmem:[%s2204] sm:$0xf]
        %v2206 = vld [vmem:[%s2204 + $0x4] sm:$0xf]
        %v2207 = vld [vmem:[%s2204 + $0x8] sm:$0xf]
        %v2208 = vld [vmem:[%s2204 + $0xc] sm:$0xf]
        %v2209 = vld [vmem:[%s2204 + $0x10] sm:$0xf]
        %v2210 = vld [vmem:[%s2204 + $0x14] sm:$0xf]
        %v2211 = vld [vmem:[%s2204 + $0x18] sm:$0xf]
        %v2212 = vld [vmem:[%s2204 + $0x1c] sm:$0xf]
        %v2213 = vpack.c.bf16 %v2201, %v2201
        %v2222 = vunpack.c.l.b16 %v2205
        %v2223 = vunpack.c.l.b16 %v2206
        %v2224 = vunpack.c.l.b16 %v2207
        %v2225 = vunpack.c.l.b16 %v2208
        %v2226 = vunpack.c.l.b16 %v2209
        %v2227 = vunpack.c.l.b16 %v2210
        %v2228 = vunpack.c.l.b16 %v2211
        %v2229 = vunpack.c.l.b16 %v2212
        %v2230 = vpack.c.b16 %v2223, %v2222
        %v2231 = vpack.c.b16 %v2225, %v2224
        %v2232 = vpack.c.b16 %v2227, %v2226
        %v2233 = vpack.c.b16 %v2229, %v2228
        %v2239 = vsel %vm683, %v2213, 0
        %2241 = vmatprep.subr.bf16.mxu0 0
        %2242 = vmatpush1.bf16.msra.mxu0 0
        %2243 = vmatprep.subr.bf16.mxu0 0
        %2244 = vmatpush1.bf16.msra.mxu0 0
        %2245 = vmatprep.subr.bf16.mxu0 0
        %2246 = vmatpush1.bf16.msra.mxu0 0
        %2247 = vmatprep.subr.bf16.mxu0 0
        %2248 = vmatpush1.bf16.msra.mxu0 0
        %2249 = vmatprep.subr.bf16.mxu0 0
        %2250 = vmatpush1.bf16.msra.mxu0 %v2233
        %2251 = vmatprep.subr.bf16.mxu0 0
        %2252 = vmatpush1.bf16.msra.mxu0 %v2232
        %2253 = vmatprep.subr.bf16.mxu0 0
        %2254 = vmatpush1.bf16.msra.mxu0 %v2231
        %2255 = vmatprep.subr.bf16.mxu0 0
        %2256 = vmatpush1.bf16.msra.mxu0 %v2230
        %2257 = vmatprep.subr.bf16.mxu0 0
        %2258 = vmatpush2.bf16.msra.mxu0 0
        %2259 = vmatprep.subr.bf16.mxu0 0
        %2260 = vmatpush2.bf16.msra.mxu0 0
        %2261 = vmatprep.subr.bf16.mxu0 0
        %2262 = vmatpush2.bf16.msra.mxu0 0
        %2263 = vmatprep.subr.bf16.mxu0 0
        %2264 = vmatpush2.bf16.msra.mxu0 0
        %2265 = vmatprep.subr.bf16.mxu0 0
        %2266 = vmatpush2.bf16.msra.mxu0 0
        %2267 = vmatprep.subr.bf16.mxu0 0
        %2268 = vmatpush2.bf16.msra.mxu0 0
        %2269 = vmatprep.subr.bf16.mxu0 0
        %2270 = vmatpush2.bf16.msra.mxu0 0
        %2271 = vmatprep.subr.bf16.mxu0 0
        %2272 = vmatpush2.bf16.msra.mxu0 0
        %2273 = vmatprep.mubr.bf16.mxu0 0
        %2274 = vmatmul.mubr.bf16.gmra.mxu0 %v2239
        %v2275 = vpop.f32.mrf.mxu0
        %v2276 = vadd.f32 0.0, %v2275
        %v2277 = vpop.f32.mrf.mxu0
        %v2278 = vpop.f32.mrf.mxu0
        %v2279 = vpop.f32.mrf.mxu0
        %2280 = vdwg.mxu0
        %v2281 = vadd.f32 %v2092, %v2276
        %s2282 = scalar_lea.vmem %s17, %s768
        %v2283 = vld [vmem:[%s2282] sm:$0x1]
        %v2285 = vlaneseq
        %v2286 = vshrl.u32 %v2285, 7
        %v2287 = vsub.s32 0, %v2286
        %v2288 = vrot.slane %v2283, %v2287
        %v2290 = vadd.f32 %v2281, %v2288
      $region97: #{vision_encoder_forward.1} parent=91 // loop_footer
        %s772 = sadd.s32 1, %s768
      $region98: #{vision_encoder_forward.1} parent=91 // loop_footer_branch
        %767 = sbr.rel target = $region94
      $region99: #{vision_encoder_forward.1} parent=91 // loop_exit
        _
      %vm2291 = vcmask 258048
      %2292 = vst.msk [vmem:[%s573] sm:$0x1f] %vm2291, %v773
      %p2293 = scmp.lt.s32.totalorder %s29, 1
      %s2294 = scalar_select %p2293, %s29, 1
      %s2295 = smul.addr %s2294, 8
      %s2296 = scalar_lea.vmem %s18, %s2295
      // Predicated region
      $region100: #{vision_encoder_forward.1} parent=91 // pred_check
        %p2297 = pneg %p430
      $region101: #{vision_encoder_forward.1} parent=91 // pred_check_branch
        %2299 = sbr.rel (%p2297) target = $region103
      $region102: #{vision_encoder_forward.1} parent=91 // pred_region
        _
      $region103: #{vision_encoder_forward.1} parent=91 // pred_fallthru
        _
    $region92: #{vision_encoder_forward.1} parent=5 // pred_fallthru
      _
    %p2300 = scmp.le.s32.totalorder 2, %s24
    // Predicated region
    $region104: #{vision_encoder_forward.1} parent=5 // pred_check
      %p2301 = pneg %p2300
    $region105: #{vision_encoder_forward.1} parent=5 // pred_check_branch
      %2303 = sbr.rel (%p2301) target = $region107
    $region106: #{vision_encoder_forward.1} parent=5 // pred_region
      %s2304 = ssub.s32 %s24, 2
      // Predicated region
      $region108: #{vision_encoder_forward.1} parent=106 // pred_check
        %p2305 = pneg %p436
      $region109: #{vision_encoder_forward.1} parent=106 // pred_check_branch
        %2307 = sbr.rel (%p2305) target = $region111
      $region110: #{vision_encoder_forward.1} parent=106 // pred_region
        %p2308 = scmp.lt.s32.totalorder %s30, 1
        %s2309 = scalar_select %p2308, %s30, 1
        %s2310 = smul.addr %s2309, 8
        %s2311 = scalar_lea.vmem %s18, %s2310
      $region111: #{vision_encoder_forward.1} parent=106 // pred_fallthru
        _
    $region107: #{vision_encoder_forward.1} parent=5 // pred_fallthru
      _
  $region6: #{vision_encoder_forward.1} parent=0 // loop_footer
    %s28 = sadd.s32 1, %s24
  $region7: #{vision_encoder_forward.1} parent=0 // loop_footer_branch
    %23 = sbr.rel target = $region3
  $region8: #{vision_encoder_forward.1} parent=0 // loop_exit
    _

</llo_original>
